<compile_context>
chip_gen: v6e
topology: v6e:2x2x1
jax: 0.10.0
libtpu: 0.0.40
codegen_flags: <defaults>
</compile_context>

<pallas_src>
import functools

import jax
import jax.numpy as jnp
import numpy as np
from jax.experimental import pallas as pl
from jax.experimental.pallas import tpu as pltpu


def _multi_attr_kernel(x_ref, wc_ref, bc_ref, wa_ref, ba_ref,
                       a_ref, feat_ref, acc_ref, *, inv_thw):
    """One (clip b, frame t) grid step.

    x_ref:    (1, 1, Cin, HW)  frame in native NCHW layout (Cin sublanes, HW lanes)
    wc_ref:   (Cout, Cin)      1x1 conv weight with BN folded in
    bc_ref:   (Cout, 1)        fused conv+BN bias
    wa_ref:   (K, Cout)        all K attention-conv weights stacked
    ba_ref:   (K, 1)           attention-conv biases
    a_ref:    (1, 1, K, HW)    sigmoid attention maps (all heads) for this frame
    feat_ref: (1, K, Cout)     per-clip pooled features (written at t == T-1)
    acc_ref:  (K, Cout) f32    VMEM accumulator across the T axis
    """
    t = pl.program_id(1)
    cin, hw = x_ref.shape[2], x_ref.shape[3]
    k, cout = wa_ref.shape

    x = x_ref[...].reshape(cin, hw)                              # (Cin, HW)

    # 1x1 conv + BN + ReLU, folded into one MXU matmul + bias + max.
    local = jnp.dot(wc_ref[...], x, preferred_element_type=jnp.float32)
    local = jnp.maximum(local + bc_ref[...], 0.0)                # (Cout, HW)

    # All K attention 1x1 convs at once (MXU), then sigmoid (EUP).
    logits = jnp.dot(wa_ref[...], local, preferred_element_type=jnp.float32)
    att = jax.nn.sigmoid(logits + ba_ref[...])                   # (K, HW)
    a_ref[...] = att.reshape(1, 1, k, hw)

    # Fused attention-weighted spatial pool + temporal mean:
    # accumulate sum_s att[k,s]*local[c,s] over frames; scale once at the end.
    partial = jax.lax.dot_general(
        att, local, (((1,), (1,)), ((), ())),
        preferred_element_type=jnp.float32)                      # (K, Cout)

    @pl.when(t == 0)
    def _():
        acc_ref[...] = jnp.zeros_like(acc_ref)

    acc_ref[...] += partial

    @pl.when(t == pl.num_programs(1) - 1)
    def _():
        feat_ref[...] = jnp.maximum(acc_ref[...] * inv_thw,
                                    0.0).reshape(1, k, cout)


def multi_attribute_recog_forward(x, b, t, params):
    """Pallas forward of MultiAttributeRecogModule (inference-mode BN).

    x: (b*t, Cin, H, W) float32 -- same layout the torch module receives.
    Returns (ys, attens): ys is a list of (b, n_k) logits; attens is
    (b, t, K, H, W), matching torch.cat(attens, 2).
    """
    bt, cin, h, w = x.shape
    assert bt == b * t
    hw = h * w

    w_conv = params["w_conv"]            # (Cout, Cin)
    cout = w_conv.shape[0]
    w_att = params["w_att"]              # (K, Cout)
    k = w_att.shape[0]

    # Fold inference-mode BatchNorm into the 1x1 conv (affine channel xform).
    # TODO(synk): training-mode BatchNorm (batch statistics) is not computed
    # in-kernel; running statistics are used, matching eval() behaviour.
    scale = params["bn_gamma"] * jax.lax.rsqrt(params["bn_var"] + params["bn_eps"])
    wc_eff = w_conv * scale[:, None]                                      # (Cout, Cin)
    bc_eff = (params["b_conv"] - params["bn_mean"]) * scale + params["bn_beta"]

    # Pure view: no HBM transpose. Channels stay on sublanes, HW on lanes.
    x_k = x.reshape(b, t, cin, hw)

    kernel = functools.partial(_multi_attr_kernel, inv_thw=1.0 / (t * hw))

    a_out, feat_out = pl.pallas_call(
        kernel,
        out_shape=(
            jax.ShapeDtypeStruct((b, t, k, hw), jnp.float32),
            jax.ShapeDtypeStruct((b, k, cout), jnp.float32),
        ),
        grid_spec=pltpu.PrefetchScalarGridSpec(
            num_scalar_prefetch=0,
            grid=(b, t),
            in_specs=[
                pl.BlockSpec((1, 1, cin, hw), lambda i, j: (i, j, 0, 0)),
                pl.BlockSpec((cout, cin), lambda i, j: (0, 0)),
                pl.BlockSpec((cout, 1), lambda i, j: (0, 0)),
                pl.BlockSpec((k, cout), lambda i, j: (0, 0)),
                pl.BlockSpec((k, 1), lambda i, j: (0, 0)),
            ],
            out_specs=[
                pl.BlockSpec((1, 1, k, hw), lambda i, j: (i, j, 0, 0)),
                pl.BlockSpec((1, k, cout), lambda i, j: (i, 0, 0)),
            ],
            scratch_shapes=[pltpu.VMEM((k, cout), jnp.float32)],
        ),
        compiler_params=pltpu.CompilerParams(
            dimension_semantics=("parallel", "arbitrary")),
    )(x_k, wc_eff, bc_eff.reshape(cout, 1), w_att,
      params["b_att"].reshape(k, 1))

    # Hoisted classifiers: one small XLA matmul per head.
    ys = [feat_out[:, i, :] @ params["w_cls"][i].T + params["b_cls"][i]
          for i in range(k)]
    attens = a_out.reshape(b, t, k, h, w)
    return ys, attens


def reference_forward(x, b, t, params):
    """Pure-JAX reference mirroring the PyTorch module (inference-mode BN)."""
    bt, cin, h, w = x.shape
    cout = params["w_conv"].shape[0]
    k = params["w_att"].shape[0]

    lf = jnp.einsum("nchw,oc->nohw", x, params["w_conv"]) \
        + params["b_conv"][None, :, None, None]
    scale = params["bn_gamma"] / jnp.sqrt(params["bn_var"] + params["bn_eps"])
    lf = (lf - params["bn_mean"][None, :, None, None]) * scale[None, :, None, None] \
        + params["bn_beta"][None, :, None, None]
    lf = jax.nn.relu(lf).reshape(b, t, cout, h, w)

    ys, attens = [], []
    for i in range(k):
        logits = jnp.einsum("btchw,c->bthw", lf, params["w_att"][i]) + params["b_att"][i]
        a = jax.nn.sigmoid(logits)[:, :, None]                  # (b,t,1,h,w)
        gf = jnp.mean(a * lf, axis=(3, 4))                      # (b,t,cout)
        feat = jax.nn.relu(jnp.mean(gf, axis=1))                # (b,cout)
        ys.append(feat @ params["w_cls"][i].T + params["b_cls"][i])
        attens.append(a)
    return ys, jnp.concatenate(attens, axis=2)


if __name__ == "__main__":
    jax.config.update("jax_default_matmul_precision", "highest")

    B, T, H, W = 2, 4, 8, 8
    IN_PLANES = 32
    OUT_PLANES = IN_PLANES // 2
    NUM_CLASSES = [5, 7, 9]
    K = len(NUM_CLASSES)

    key = jax.random.PRNGKey(0)
    ks = jax.random.split(key, 8 + K)

    x = jax.random.normal(ks[0], (B * T, IN_PLANES, H, W), dtype=jnp.float32)

    params = dict(
        # conv: Conv2d(Cin, Cout, 1) -- kaiming fan_in.
        w_conv=(jax.random.normal(ks[1], (OUT_PLANES, IN_PLANES), jnp.float32)
                * np.sqrt(2.0 / IN_PLANES)).astype(jnp.float32),
        b_conv=0.01 * jax.random.normal(ks[2], (OUT_PLANES,), jnp.float32),
        # BatchNorm2d affine + running stats (inference mode).
        bn_gamma=1.0 + 0.1 * jax.random.normal(ks[3], (OUT_PLANES,), jnp.float32),
        bn_beta=0.1 * jax.random.normal(ks[4], (OUT_PLANES,), jnp.float32),
        bn_mean=0.1 * jax.random.normal(ks[5], (OUT_PLANES,), jnp.float32),
        bn_var=0.5 + jnp.abs(jax.random.normal(ks[6], (OUT_PLANES,), jnp.float32)),
        bn_eps=1e-5,
        # attention convs: Conv2d(Cout, 1, 1) per head -- kaiming fan_in, bias 0.
        w_att=(jax.random.normal(ks[7], (K, OUT_PLANES), jnp.float32)
               * np.sqrt(2.0 / OUT_PLANES)).astype(jnp.float32),
        b_att=jnp.zeros((K,), jnp.float32),
        # classifiers: Linear(Cout, n_k), weight ~ N(0, 0.001), bias 0.
        w_cls=[jax.random.normal(ks[8 + i], (n, OUT_PLANES), jnp.float32) * 1e-3
               for i, n in enumerate(NUM_CLASSES)],
        b_cls=[jnp.zeros((n,), jnp.float32) for n in NUM_CLASSES],
    )

    ys, attens = multi_attribute_recog_forward(x, B, T, params)
    jax.block_until_ready((ys, attens))

    ys_ref, attens_ref = reference_forward(x, B, T, params)
    np.testing.assert_allclose(np.asarray(attens), np.asarray(attens_ref),
                               rtol=1e-4, atol=1e-5)
    for yk, yk_ref in zip(ys, ys_ref):
        np.testing.assert_allclose(np.asarray(yk), np.asarray(yk_ref),
                                   rtol=1e-4, atol=1e-5)

    print("KERNEL_OK")
</pallas_src>

<mosaic_0001>
module attributes {stable_mosaic.version = 11 : i64} {
  func.func @_multi_attr_kernel(%arg0: i32, %arg1: i32, %arg2: memref<1x1x32x64xf32, #tpu.memory_space<vmem>>, %arg3: memref<16x32xf32, #tpu.memory_space<vmem>>, %arg4: memref<16x1xf32, #tpu.memory_space<vmem>>, %arg5: memref<3x16xf32, #tpu.memory_space<vmem>>, %arg6: memref<3x1xf32, #tpu.memory_space<vmem>>, %arg7: memref<1x1x3x64xf32, #tpu.memory_space<vmem>>, %arg8: memref<1x3x16xf32, #tpu.memory_space<vmem>>, %arg9: memref<3x16xf32, #tpu.memory_space<vmem>>) attributes {dimension_semantics = [#tpu.dimension_semantics<parallel>, #tpu.dimension_semantics<arbitrary>], iteration_bounds = array<i64: 2, 4>, scalar_prefetch = 0 : i64, scratch_operands = 1 : i64, tpu.core_type = #tpu.core_type<tc>, window_params = [{transform_indices = @transform_0, window_bounds = array<i64: 1, 1, 32, 64>}, {pipeline_mode = #tpu.pipeline_mode<synchronous>, transform_indices = @transform_1, window_bounds = array<i64: 16, 32>}, {pipeline_mode = #tpu.pipeline_mode<synchronous>, transform_indices = @transform_2, window_bounds = array<i64: 16, 1>}, {pipeline_mode = #tpu.pipeline_mode<synchronous>, transform_indices = @transform_3, window_bounds = array<i64: 3, 16>}, {pipeline_mode = #tpu.pipeline_mode<synchronous>, transform_indices = @transform_4, window_bounds = array<i64: 3, 1>}, {transform_indices = @transform_5, window_bounds = array<i64: 1, 1, 3, 64>}, {transform_indices = @transform_6, window_bounds = array<i64: 1, 3, 16>}]} {
    %c0 = arith.constant 0 : index
    %c0_0 = arith.constant 0 : index
    %c0_1 = arith.constant 0 : index
    %c0_2 = arith.constant 0 : index
    %0 = vector.load %arg2[%c0, %c0_0, %c0_1, %c0_2] : memref<1x1x32x64xf32, #tpu.memory_space<vmem>>, vector<1x1x32x64xf32>
    %1 = vector.shape_cast %0 : vector<1x1x32x64xf32> to vector<32x64xf32>
    %c0_3 = arith.constant 0 : index
    %c0_4 = arith.constant 0 : index
    %2 = vector.load %arg3[%c0_3, %c0_4] : memref<16x32xf32, #tpu.memory_space<vmem>>, vector<16x32xf32>
    %cst = arith.constant dense<0.000000e+00> : vector<16x64xf32>
    %3 = tpu.matmul %2, %1, %cst {dimension_numbers = #tpu.dot_dimension_numbers<[1], [0], [0], [1], [0, 0, 1, 1], [], []>, precision = #tpu.contract_precision<fp32>} : vector<16x32xf32>, vector<32x64xf32>, vector<16x64xf32> -> vector<16x64xf32>
    %c0_5 = arith.constant 0 : index
    %c0_6 = arith.constant 0 : index
    %4 = vector.load %arg4[%c0_5, %c0_6] : memref<16x1xf32, #tpu.memory_space<vmem>>, vector<16x1xf32>
    %5 = vector.broadcast %4 : vector<16x1xf32> to vector<16x64xf32>
    %6 = arith.addf %3, %5 : vector<16x64xf32>
    %cst_7 = arith.constant 0.000000e+00 : f32
    %7 = vector.broadcast %cst_7 : f32 to vector<16x64xf32>
    %8 = arith.maximumf %6, %7 : vector<16x64xf32>
    %c0_8 = arith.constant 0 : index
    %c0_9 = arith.constant 0 : index
    %9 = vector.load %arg5[%c0_8, %c0_9] : memref<3x16xf32, #tpu.memory_space<vmem>>, vector<3x16xf32>
    %cst_10 = arith.constant dense<0.000000e+00> : vector<3x64xf32>
    %10 = tpu.matmul %9, %8, %cst_10 {dimension_numbers = #tpu.dot_dimension_numbers<[1], [0], [0], [1], [0, 0, 1, 1], [], []>, precision = #tpu.contract_precision<fp32>} : vector<3x16xf32>, vector<16x64xf32>, vector<3x64xf32> -> vector<3x64xf32>
    %c0_11 = arith.constant 0 : index
    %c0_12 = arith.constant 0 : index
    %11 = vector.load %arg6[%c0_11, %c0_12] : memref<3x1xf32, #tpu.memory_space<vmem>>, vector<3x1xf32>
    %12 = vector.broadcast %11 : vector<3x1xf32> to vector<3x64xf32>
    %13 = arith.addf %10, %12 : vector<3x64xf32>
    %14 = arith.negf %13 : vector<3x64xf32>
    %15 = math.exp %14 : vector<3x64xf32>
    %cst_13 = arith.constant 1.000000e+00 : f32
    %16 = vector.broadcast %cst_13 : f32 to vector<3x64xf32>
    %17 = arith.addf %16, %15 : vector<3x64xf32>
    %18 = arith.divf %16, %17 : vector<3x64xf32>
    %19 = vector.shape_cast %18 : vector<3x64xf32> to vector<1x1x3x64xf32>
    %c0_14 = arith.constant 0 : index
    %c0_15 = arith.constant 0 : index
    %c0_16 = arith.constant 0 : index
    %c0_17 = arith.constant 0 : index
    %20 = vector.load %arg7[%c0_14, %c0_15, %c0_16, %c0_17] : memref<1x1x3x64xf32, #tpu.memory_space<vmem>>, vector<1x1x3x64xf32>
    tpu.vector_store %arg7[%c0_14, %c0_15, %c0_16, %c0_17], %19 {strides = array<i32>} : memref<1x1x3x64xf32, #tpu.memory_space<vmem>>, vector<1x1x3x64xf32>,
    %cst_18 = arith.constant dense<0.000000e+00> : vector<3x16xf32>
    %21 = tpu.matmul %18, %8, %cst_18 {dimension_numbers = #tpu.dot_dimension_numbers<[1], [1], [0], [0], [0, 0, 1, 0], [], []>, precision = #tpu.contract_precision<fp32>} : vector<3x64xf32>, vector<16x64xf32>, vector<3x16xf32> -> vector<3x16xf32>
    %c0_i32 = arith.constant 0 : i32
    %22 = arith.cmpi eq, %arg1, %c0_i32 : i32
    %23 = arith.extui %22 : i1 to i32
    %c0_i32_19 = arith.constant 0 : i32
    %24 = arith.cmpi ne, %23, %c0_i32_19 : i32
    scf.if %24 {
      %cst_25 = arith.constant 0.000000e+00 : f32
      %31 = vector.broadcast %cst_25 : f32 to vector<3x16xf32>
      %c0_26 = arith.constant 0 : index
      %c0_27 = arith.constant 0 : index
      %32 = vector.load %arg9[%c0_26, %c0_27] : memref<3x16xf32, #tpu.memory_space<vmem>>, vector<3x16xf32>
      tpu.vector_store %arg9[%c0_26, %c0_27], %31 {strides = array<i32>} : memref<3x16xf32, #tpu.memory_space<vmem>>, vector<3x16xf32>,
    } else {
    }
    %c0_20 = arith.constant 0 : index
    %c0_21 = arith.constant 0 : index
    %25 = vector.load %arg9[%c0_20, %c0_21] : memref<3x16xf32, #tpu.memory_space<vmem>>, vector<3x16xf32>
    %26 = arith.addf %25, %21 : vector<3x16xf32>
    %c0_22 = arith.constant 0 : index
    %c0_23 = arith.constant 0 : index
    %27 = vector.load %arg9[%c0_22, %c0_23] : memref<3x16xf32, #tpu.memory_space<vmem>>, vector<3x16xf32>
    tpu.vector_store %arg9[%c0_22, %c0_23], %26 {strides = array<i32>} : memref<3x16xf32, #tpu.memory_space<vmem>>, vector<3x16xf32>,
    %c3_i32 = arith.constant 3 : i32
    %28 = arith.cmpi eq, %arg1, %c3_i32 : i32
    %29 = arith.extui %28 : i1 to i32
    %c0_i32_24 = arith.constant 0 : i32
    %30 = arith.cmpi ne, %29, %c0_i32_24 : i32
    scf.if %30 {
      %c0_25 = arith.constant 0 : index
      %c0_26 = arith.constant 0 : index
      %31 = vector.load %arg9[%c0_25, %c0_26] : memref<3x16xf32, #tpu.memory_space<vmem>>, vector<3x16xf32>
      %cst_27 = arith.constant 3.906250e-03 : f32
      %32 = vector.broadcast %cst_27 : f32 to vector<3x16xf32>
      %33 = arith.mulf %31, %32 : vector<3x16xf32>
      %cst_28 = arith.constant 0.000000e+00 : f32
      %34 = vector.broadcast %cst_28 : f32 to vector<3x16xf32>
      %35 = arith.maximumf %33, %34 : vector<3x16xf32>
      %36 = vector.shape_cast %35 : vector<3x16xf32> to vector<1x3x16xf32>
      %c0_29 = arith.constant 0 : index
      %c0_30 = arith.constant 0 : index
      %c0_31 = arith.constant 0 : index
      %37 = vector.load %arg8[%c0_29, %c0_30, %c0_31] : memref<1x3x16xf32, #tpu.memory_space<vmem>>, vector<1x3x16xf32>
      tpu.vector_store %arg8[%c0_29, %c0_30, %c0_31], %36 {strides = array<i32>} : memref<1x3x16xf32, #tpu.memory_space<vmem>>, vector<1x3x16xf32>,
    } else {
    }
    return
  }
  func.func @transform_0(%arg0: i32, %arg1: i32) -> (i32, i32, i32, i32) {
    %c0_i32 = arith.constant 0 : i32
    %c0_i32_0 = arith.constant 0 : i32
    %c0_i32_1 = arith.constant 0 : i32
    return %arg0, %arg1, %c0_i32, %c0_i32_0 : i32, i32, i32, i32
  }
  func.func @transform_1(%arg0: i32, %arg1: i32) -> (i32, i32) {
    %c0_i32 = arith.constant 0 : i32
    %c0_i32_0 = arith.constant 0 : i32
    %c0_i32_1 = arith.constant 0 : i32
    return %c0_i32, %c0_i32_0 : i32, i32
  }
  func.func @transform_2(%arg0: i32, %arg1: i32) -> (i32, i32) {
    %c0_i32 = arith.constant 0 : i32
    %c0_i32_0 = arith.constant 0 : i32
    %c0_i32_1 = arith.constant 0 : i32
    return %c0_i32, %c0_i32_0 : i32, i32
  }
  func.func @transform_3(%arg0: i32, %arg1: i32) -> (i32, i32) {
    %c0_i32 = arith.constant 0 : i32
    %c0_i32_0 = arith.constant 0 : i32
    %c0_i32_1 = arith.constant 0 : i32
    return %c0_i32, %c0_i32_0 : i32, i32
  }
  func.func @transform_4(%arg0: i32, %arg1: i32) -> (i32, i32) {
    %c0_i32 = arith.constant 0 : i32
    %c0_i32_0 = arith.constant 0 : i32
    %c0_i32_1 = arith.constant 0 : i32
    return %c0_i32, %c0_i32_0 : i32, i32
  }
  func.func @transform_5(%arg0: i32, %arg1: i32) -> (i32, i32, i32, i32) {
    %c0_i32 = arith.constant 0 : i32
    %c0_i32_0 = arith.constant 0 : i32
    %c0_i32_1 = arith.constant 0 : i32
    return %arg0, %arg1, %c0_i32, %c0_i32_0 : i32, i32, i32, i32
  }
  func.func @transform_6(%arg0: i32, %arg1: i32) -> (i32, i32, i32) {
    %c0_i32 = arith.constant 0 : i32
    %c0_i32_0 = arith.constant 0 : i32
    %c0_i32_1 = arith.constant 0 : i32
    return %arg0, %c0_i32, %c0_i32_0 : i32, i32, i32
  }
}

</mosaic_0001>

<llo_original>
// kernel: tpu_custom_call.1
$region0: #{tpu_custom_call.1}
  #allocation0 [shape = 'u32[]', space=smem, size = 0x4, offset = 0x4, fixed_abs, tag = 'smem constant byte address 0x4 - core index']
  #allocation1 [shape = 'u32[144,128]{1,0:T(1,128)}', space=vmem, size = 0x12000, scoped, tag = 'internal scratch']
  #allocation2 [shape = 'f32[3,16]{1,0:T(4,128)}', space=vmem, size = 0x800, scoped, tag = 'scratch operand']
  %s0 = inlined_call_operand.hbm [shape: f32[2,4,32,64], index: 0, kind: input, shape index: {}]
  %s1 = inlined_call_operand.vmem [shape: f32[16,32], index: 1, kind: input, shape index: {}]
  %s2 = inlined_call_operand.vmem [shape: f32[16,1], index: 2, kind: input, shape index: {}]
  %s3 = inlined_call_operand.vmem [shape: f32[3,16], index: 3, kind: input, shape index: {}]
  %s4 = inlined_call_operand.vmem [shape: f32[3,1], index: 4, kind: input, shape index: {}]
  %s5 = inlined_call_operand.vmem [shape: f32[2,4,3,64], index: 5, kind: output, shape index: {0}]
  %s6 = inlined_call_operand.vmem [shape: f32[2,3,16], index: 6, kind: output, shape index: {1}]
  %7 = xla_tuple %s5, %s6
  %s8 = sld [smem:[#allocation0]]
  $region73: #{tpu_custom_call.1} parent=0
    _
  %s10 = ssub.s32 1, %s8
  %s11 = scalar_select 0, %s10, %s8
  $region1: #{tpu_custom_call.1} parent=0
    #allocation3 [shape = 'u8[32768]{0}', space=vmem, size = 0x8000, scoped, tag = 'input window, operand 0']
    #allocation4 [shape = 's32[2]{0}', space=sflag, size = 0x8, scoped, tag = 'scoped memory for tpu_custom_call.1']
    %12 = vsyncpa [#allocation4], 0
    %s13 = scalar_lea.sflag [#allocation4], 1
    %14 = vsyncpa %s13, 0
    loop: start=0, step=1, limit=10
    $region2: #{tpu_custom_call.1} parent=1 // loop_pre_header
      _
    $region3: #{tpu_custom_call.1} parent=1 // loop_header
      %s16 = sphi 0, %s20
      %p17 = scmp.ge.s32.totalorder %s16, 10
      %s23 = sphi 0, %s35
      %s24 = sphi 0, %s31
      %s25 = sphi 0, %s23
      %s26 = sphi 0, %s24
      %s27 = sphi 0, %s25
      %s28 = sphi 0, %s26
      %s40 = sphi 0, %s42
      %s43 = sphi 0, %s40
      %s44 = sphi 0, %s43
      %s60 = sphi 0, %s44
      %s64 = sphi 0, %s64
      %s66 = sphi 0, %s64
      %s67 = sphi 0, %s66
      %s81 = sphi 0, %s67
      %s85 = sphi 0, %s85
      %s87 = sphi 0, %s85
      %s88 = sphi 0, %s87
      %s102 = sphi 0, %s88
      %s106 = sphi 0, %s106
      %s108 = sphi 0, %s106
      %s109 = sphi 0, %s108
      %s123 = sphi 0, %s109
      %s127 = sphi 0, %s127
      %s129 = sphi 0, %s127
      %s130 = sphi 0, %s129
      %s144 = sphi 0, %s130
      %s152 = sphi 0, %s154
      %s155 = sphi 0, %s152
      %s156 = sphi 0, %s155
      %s172 = sphi 0, %s156
      %s178 = sphi 0, %s180
      %s181 = sphi 0, %s178
      %s182 = sphi 0, %s181
      %s198 = sphi 0, %s182
    $region4: #{tpu_custom_call.1} parent=1 // loop_header_branch
      %19 = sbr.rel (%p17) target = $region8
    $region5: #{tpu_custom_call.1} parent=1 // loop_body
      %s21 = ssub.s32 %s16, 1
      %s22 = ssub.s32 %s16, 2
      %s29 = sadd.s32 1, %s24
      %p30 = scmp.ge.s32.totalorder %s29, 4
      %s31 = scalar_select %p30, 0, %s29
      %s32 = sadd.s32 1, %s23
      %s33 = scalar_select %p30, %s32, %s23
      %p34 = scmp.ge.s32.totalorder %s33, 2
      %s35 = scalar_select %p34, 0, %s33
      %s36 = ssub.s32 %s23, %s35
      %s37 = ssub.s32 %s24, %s31
      %s38 = sor.u32 %s36, %s37
      %p39 = scmp.eq.s32.totalorder %s38, 0
      %s41 = sadd.s32 %s40, 1
      %s42 = scalar_select %p39, %s40, %s41
      %p45 = pneg %p39
      %p46 = scmp.eq.s32.totalorder %s16, 7
      %p47 = por %p45, %p46
      %p48 = scmp.ne.s32.totalorder %s40, %s43
      %p49 = scmp.eq.s32.totalorder %s16, 0
      %p50 = por %p48, %p49
      %p51 = scmp.ne.s32.totalorder %s40, %s43
      %p52 = scmp.eq.s32.totalorder %s21, 7
      %p53 = por %p51, %p52
      %p54 = scmp.ne.s32.totalorder %s43, %s44
      %p55 = scmp.eq.s32.totalorder %s21, 0
      %p56 = por %p54, %p55
      %p57 = scmp.ne.s32.totalorder %s43, %s44
      %p58 = scmp.eq.s32.totalorder %s22, 7
      %p59 = por %p57, %p58
      %p61 = scmp.ne.s32.totalorder %s44, %s60
      %p62 = scmp.eq.s32.totalorder %s22, 0
      %p63 = por %p61, %p62
      %s65 = sadd.s32 %s64, 1
      %p68 = scmp.eq.s32.totalorder %s16, 7
      %p69 = scmp.ne.s32.totalorder %s64, %s66
      %p70 = scmp.eq.s32.totalorder %s16, 0
      %p71 = por %p69, %p70
      %p72 = scmp.ne.s32.totalorder %s64, %s66
      %p73 = scmp.eq.s32.totalorder %s21, 7
      %p74 = por %p72, %p73
      %p75 = scmp.ne.s32.totalorder %s66, %s67
      %p76 = scmp.eq.s32.totalorder %s21, 0
      %p77 = por %p75, %p76
      %p78 = scmp.ne.s32.totalorder %s66, %s67
      %p79 = scmp.eq.s32.totalorder %s22, 7
      %p80 = por %p78, %p79
      %p82 = scmp.ne.s32.totalorder %s67, %s81
      %p83 = scmp.eq.s32.totalorder %s22, 0
      %p84 = por %p82, %p83
      %s86 = sadd.s32 %s85, 1
      %p89 = scmp.eq.s32.totalorder %s16, 7
      %p90 = scmp.ne.s32.totalorder %s85, %s87
      %p91 = scmp.eq.s32.totalorder %s16, 0
      %p92 = por %p90, %p91
      %p93 = scmp.ne.s32.totalorder %s85, %s87
      %p94 = scmp.eq.s32.totalorder %s21, 7
      %p95 = por %p93, %p94
      %p96 = scmp.ne.s32.totalorder %s87, %s88
      %p97 = scmp.eq.s32.totalorder %s21, 0
      %p98 = por %p96, %p97
      %p99 = scmp.ne.s32.totalorder %s87, %s88
      %p100 = scmp.eq.s32.totalorder %s22, 7
      %p101 = por %p99, %p100
      %p103 = scmp.ne.s32.totalorder %s88, %s102
      %p104 = scmp.eq.s32.totalorder %s22, 0
      %p105 = por %p103, %p104
      %s107 = sadd.s32 %s106, 1
      %p110 = scmp.eq.s32.totalorder %s16, 7
      %p111 = scmp.ne.s32.totalorder %s106, %s108
      %p112 = scmp.eq.s32.totalorder %s16, 0
      %p113 = por %p111, %p112
      %p114 = scmp.ne.s32.totalorder %s106, %s108
      %p115 = scmp.eq.s32.totalorder %s21, 7
      %p116 = por %p114, %p115
      %p117 = scmp.ne.s32.totalorder %s108, %s109
      %p118 = scmp.eq.s32.totalorder %s21, 0
      %p119 = por %p117, %p118
      %p120 = scmp.ne.s32.totalorder %s108, %s109
      %p121 = scmp.eq.s32.totalorder %s22, 7
      %p122 = por %p120, %p121
      %p124 = scmp.ne.s32.totalorder %s109, %s123
      %p125 = scmp.eq.s32.totalorder %s22, 0
      %p126 = por %p124, %p125
      %s128 = sadd.s32 %s127, 1
      %p131 = scmp.eq.s32.totalorder %s16, 7
      %p132 = scmp.ne.s32.totalorder %s127, %s129
      %p133 = scmp.eq.s32.totalorder %s16, 0
      %p134 = por %p132, %p133
      %p135 = scmp.ne.s32.totalorder %s127, %s129
      %p136 = scmp.eq.s32.totalorder %s21, 7
      %p137 = por %p135, %p136
      %p138 = scmp.ne.s32.totalorder %s129, %s130
      %p139 = scmp.eq.s32.totalorder %s21, 0
      %p140 = por %p138, %p139
      %p141 = scmp.ne.s32.totalorder %s129, %s130
      %p142 = scmp.eq.s32.totalorder %s22, 7
      %p143 = por %p141, %p142
      %p145 = scmp.ne.s32.totalorder %s130, %s144
      %p146 = scmp.eq.s32.totalorder %s22, 0
      %p147 = por %p145, %p146
      %s148 = ssub.s32 %s23, %s35
      %s149 = ssub.s32 %s24, %s31
      %s150 = sor.u32 %s148, %s149
      %p151 = scmp.eq.s32.totalorder %s150, 0
      %s153 = sadd.s32 %s152, 1
      %s154 = scalar_select %p151, %s152, %s153
      %p157 = pneg %p151
      %p158 = scmp.eq.s32.totalorder %s16, 7
      %p159 = por %p157, %p158
      %p160 = scmp.ne.s32.totalorder %s152, %s155
      %p161 = scmp.eq.s32.totalorder %s16, 0
      %p162 = por %p160, %p161
      %p163 = scmp.ne.s32.totalorder %s152, %s155
      %p164 = scmp.eq.s32.totalorder %s21, 7
      %p165 = por %p163, %p164
      %p166 = scmp.ne.s32.totalorder %s155, %s156
      %p167 = scmp.eq.s32.totalorder %s21, 0
      %p168 = por %p166, %p167
      %p169 = scmp.ne.s32.totalorder %s155, %s156
      %p170 = scmp.eq.s32.totalorder %s22, 7
      %p171 = por %p169, %p170
      %p173 = scmp.ne.s32.totalorder %s156, %s172
      %p174 = scmp.eq.s32.totalorder %s22, 0
      %p175 = por %p173, %p174
      %s176 = ssub.s32 %s23, %s35
      %p177 = scmp.eq.s32.totalorder %s176, 0
      %s179 = sadd.s32 %s178, 1
      %s180 = scalar_select %p177, %s178, %s179
      %p183 = pneg %p177
      %p184 = scmp.eq.s32.totalorder %s16, 7
      %p185 = por %p183, %p184
      %p186 = scmp.ne.s32.totalorder %s178, %s181
      %p187 = scmp.eq.s32.totalorder %s16, 0
      %p188 = por %p186, %p187
      %p189 = scmp.ne.s32.totalorder %s178, %s181
      %p190 = scmp.eq.s32.totalorder %s21, 7
      %p191 = por %p189, %p190
      %p192 = scmp.ne.s32.totalorder %s181, %s182
      %p193 = scmp.eq.s32.totalorder %s21, 0
      %p194 = por %p192, %p193
      %p195 = scmp.ne.s32.totalorder %s181, %s182
      %p196 = scmp.eq.s32.totalorder %s22, 7
      %p197 = por %p195, %p196
      %p199 = scmp.ne.s32.totalorder %s182, %s198
      %p200 = scmp.eq.s32.totalorder %s22, 0
      %p201 = por %p199, %p200
      %p202 = scmp.le.s32.totalorder 1, %s16
      %p203 = scmp.lt.s32.totalorder %s16, 9
      %p204 = pnand %p202, %p203
      %p205 = pneg %p204
      // Predicated region
      $region9: #{tpu_custom_call.1} parent=5 // pred_check
        _
      $region10: #{tpu_custom_call.1} parent=5 // pred_check_branch
        %207 = sbr.rel (%p204) target = $region12
      $region11: #{tpu_custom_call.1} parent=5 // pred_region
        %s208 = ssub.s32 %s16, 1
        // Predicated region
        $region13: #{tpu_custom_call.1} parent=11 // pred_check
          %p209 = pneg %p77
        $region14: #{tpu_custom_call.1} parent=11 // pred_check_branch
          %211 = sbr.rel (%p209) target = $region16
        $region15: #{tpu_custom_call.1} parent=11 // pred_region
          _
        $region16: #{tpu_custom_call.1} parent=11 // pred_fallthru
          _
        // Predicated region
        $region17: #{tpu_custom_call.1} parent=11 // pred_check
          %p212 = pneg %p98
        $region18: #{tpu_custom_call.1} parent=11 // pred_check_branch
          %214 = sbr.rel (%p212) target = $region20
        $region19: #{tpu_custom_call.1} parent=11 // pred_region
          _
        $region20: #{tpu_custom_call.1} parent=11 // pred_fallthru
          _
        // Predicated region
        $region21: #{tpu_custom_call.1} parent=11 // pred_check
          %p215 = pneg %p119
        $region22: #{tpu_custom_call.1} parent=11 // pred_check_branch
          %217 = sbr.rel (%p215) target = $region24
        $region23: #{tpu_custom_call.1} parent=11 // pred_region
          _
        $region24: #{tpu_custom_call.1} parent=11 // pred_fallthru
          _
        // Predicated region
        $region25: #{tpu_custom_call.1} parent=11 // pred_check
          %p218 = pneg %p140
        $region26: #{tpu_custom_call.1} parent=11 // pred_check_branch
          %220 = sbr.rel (%p218) target = $region28
        $region27: #{tpu_custom_call.1} parent=11 // pred_region
          _
        $region28: #{tpu_custom_call.1} parent=11 // pred_fallthru
          _
      $region12: #{tpu_custom_call.1} parent=5 // pred_fallthru
        _
      %p221 = scmp.lt.s32.totalorder %s16, 8
      // Predicated region
      $region29: #{tpu_custom_call.1} parent=5 // pred_check
        %p222 = pneg %p221
      $region30: #{tpu_custom_call.1} parent=5 // pred_check_branch
        %224 = sbr.rel (%p222) target = $region32
      $region31: #{tpu_custom_call.1} parent=5 // pred_region
        // Predicated region
        $region33: #{tpu_custom_call.1} parent=31 // pred_check
          %p225 = pneg %p50
        $region34: #{tpu_custom_call.1} parent=31 // pred_check_branch
          %227 = sbr.rel (%p225) target = $region36
        $region35: #{tpu_custom_call.1} parent=31 // pred_region
          %s228 = sand.u32 %s40, 1
          %s229 = scalar_lea.sflag [#allocation4], %s228
          %s230 = sand.u32 %s40, 1
          %s231 = smul.addr %s230, 32
          %s232 = scalar_lea.vmem [#allocation3], %s231
          %s234 = ssub.s32 512, 512
          %235 = vsyncadd %s229, %s234
          %s236 = smul.addr %s24, 4
          %s237 = smul.addr %s23, 16
          %s238 = sadd.s32 %s236, %s237
          %s239 = smul.addr %s238, 128
          %s240 = scalar_lea.hbm %s0, %s239
          %s241 = sshll.u32 %s232, 4
          %s242 = int_to_ptr.vmem [resolvable:$true] %s241
          %247 = dma.hbm_to_vmem [thread:$0]  %s240, 512, %s242, %s229, 128, 128, 8
        $region36: #{tpu_custom_call.1} parent=31 // pred_fallthru
          _
      $region32: #{tpu_custom_call.1} parent=5 // pred_fallthru
        _
      %p248 = scmp.le.s32.totalorder 1, %s16
      %p249 = scmp.lt.s32.totalorder %s16, 9
      %p250 = pnand %p248, %p249
      %p251 = pneg %p250
      // Predicated region
      $region37: #{tpu_custom_call.1} parent=5 // pred_check
        _
      $region38: #{tpu_custom_call.1} parent=5 // pred_check_branch
        %253 = sbr.rel (%p250) target = $region40
      $region39: #{tpu_custom_call.1} parent=5 // pred_region
        %s254 = ssub.s32 %s16, 1
        %s255 = sand.u32 %s43, 1
        %s256 = scalar_lea.sflag [#allocation4], %s255
        %s257 = sand.u32 %s43, 1
        %s258 = smul.addr %s257, 32
        %s259 = scalar_lea.vmem [#allocation3], %s258
        // Predicated region
        $region41: #{tpu_custom_call.1} parent=39 // pred_check
          %p260 = pneg %p56
        $region42: #{tpu_custom_call.1} parent=39 // pred_check_branch
          %262 = sbr.rel (%p260) target = $region44
        $region43: #{tpu_custom_call.1} parent=39 // pred_region
          %263 = dma.done %s256, 512
        $region44: #{tpu_custom_call.1} parent=39 // pred_fallthru
          _
        %s264 = sand.u32 %s43, 1
        %s265 = scalar_lea.sflag [#allocation4], %s264
        %s266 = sand.u32 %s43, 1
        %s267 = smul.addr %s266, 32
        %s268 = scalar_lea.vmem [#allocation3], %s267
        %p269 = pneg %p56
        %p270 = pneg %p53
        %p271 = pneg %p77
        %p272 = pneg %p74
        %p273 = pneg %p98
        %p274 = pneg %p95
        %p275 = pneg %p119
        %p276 = pneg %p116
        %p277 = pneg %p140
        %p278 = pneg %p137
        %p279 = pneg %p168
        %p280 = pneg %p165
        %p281 = scmp.lt.s32.totalorder %s25, 1
        %s282 = scalar_select %p281, %s25, 1
        %p283 = scmp.lt.s32.totalorder %s26, 3
        %s284 = scalar_select %p283, %s26, 3
        %s285 = smul.addr %s282, 4
        %s286 = sadd.s32 %s284, %s285
        %s287 = smul.addr %s286, 4
        %s288 = scalar_lea.vmem %s5, %s287
        %p289 = pneg %p194
        %p290 = pneg %p191
        %p291 = scmp.lt.s32.totalorder %s25, 1
        %s292 = scalar_select %p291, %s25, 1
        %s293 = smul.addr %s292, 4
        %s294 = scalar_lea.vmem %s6, %s293
        %p295 = scmp.lt.s32.totalorder %s25, 1
        %s296 = scalar_select %p295, %s25, 1
        %p297 = scmp.lt.s32.totalorder %s26, 3
        %s298 = scalar_select %p297, %s26, 3
        %s299 = smul.addr %s296, 4
        %s300 = sadd.s32 %s298, %s299
        %s301 = smul.addr %s300, 4
        %s302 = scalar_lea.vmem %s5, %s301
        %p303 = scmp.lt.s32.totalorder %s25, 1
        %s304 = scalar_select %p303, %s25, 1
        %s305 = smul.addr %s304, 4
        %s306 = scalar_lea.vmem %s6, %s305
        %v307 = vld [vmem:[%s259] sm:$0xff]
        %v308 = vld [vmem:[%s259 + $0x8] sm:$0xff]
        %v309 = vld [vmem:[%s259 + $0x10] sm:$0xff]
        %v310 = vld [vmem:[%s259 + $0x18] sm:$0xff]
        %v311 = vld [vmem:[%s1] sm:$0xff]
        %v312 = vld [vmem:[%s1 + $0x8] sm:$0xff]
        %v313 = vld [vmem:[%s2] sm:$0xff]
        %v314 = vld [vmem:[%s2 + $0x8] sm:$0xff]
        %316 = vset.pattern.permute.xlu0 0
        %317 = vperm.xlu0 %316, %v313
        %v318 = vpop.permute.xlu0 %317
        %321 = vset.pattern.permute.xlu0 0
        %322 = vperm.xlu0 %321, %v314
        %v323 = vpop.permute.xlu0 %322
        %vm325 = vcmask 261120
        %v327 = vsel %vm325, %v311, 0
        %v330 = vsel %vm325, %v312, 0
        %332 = vmatprep.subr.mxu0 0.0
        %333 = vmatpush1.msra.mxu0 0.0
        %334 = vmatprep.subr.mxu0 0.0
        %335 = vmatpush1.msra.mxu0 0.0
        %336 = vmatprep.subr.mxu0 0.0
        %337 = vmatpush1.msra.mxu0 0.0
        %338 = vmatprep.subr.mxu0 0.0
        %339 = vmatpush1.msra.mxu0 0.0
        %340 = vmatprep.subr.mxu0 0.0
        %341 = vmatpush1.msra.mxu0 0.0
        %342 = vmatprep.subr.mxu0 0.0
        %343 = vmatpush1.msra.mxu0 0.0
        %344 = vmatprep.subr.mxu0 0.0
        %345 = vmatpush1.msra.mxu0 0.0
        %346 = vmatprep.subr.mxu0 0.0
        %347 = vmatpush1.msra.mxu0 0.0
        %348 = vmatprep.subr.mxu0 0.0
        %349 = vmatpush1.msra.mxu0 0.0
        %350 = vmatprep.subr.mxu0 0.0
        %351 = vmatpush1.msra.mxu0 0.0
        %352 = vmatprep.subr.mxu0 0.0
        %353 = vmatpush1.msra.mxu0 0.0
        %354 = vmatprep.subr.mxu0 0.0
        %355 = vmatpush1.msra.mxu0 0.0
        %356 = vmatprep.subr.mxu0 0.0
        %v357 = vand.u32 %v310, 4294901760
        %358 = vmatpush1.msra.mxu0 %v357
        %359 = vmatprep.subr.mxu0 0.0
        %v360 = vand.u32 %v309, 4294901760
        %361 = vmatpush1.msra.mxu0 %v360
        %362 = vmatprep.subr.mxu0 0.0
        %v363 = vand.u32 %v308, 4294901760
        %364 = vmatpush1.msra.mxu0 %v363
        %365 = vmatprep.subr.mxu0 0.0
        %v366 = vand.u32 %v307, 4294901760
        %367 = vmatpush1.msra.mxu0 %v366
        %368 = vmatprep.subr.mxu0 0.0
        %369 = vmatpush2.msra.mxu0 0.0
        %370 = vmatprep.subr.mxu0 0.0
        %371 = vmatpush2.msra.mxu0 0.0
        %372 = vmatprep.subr.mxu0 0.0
        %373 = vmatpush2.msra.mxu0 0.0
        %374 = vmatprep.subr.mxu0 0.0
        %375 = vmatpush2.msra.mxu0 0.0
        %376 = vmatprep.subr.mxu0 0.0
        %377 = vmatpush2.msra.mxu0 0.0
        %378 = vmatprep.subr.mxu0 0.0
        %379 = vmatpush2.msra.mxu0 0.0
        %380 = vmatprep.subr.mxu0 0.0
        %381 = vmatpush2.msra.mxu0 0.0
        %382 = vmatprep.subr.mxu0 0.0
        %383 = vmatpush2.msra.mxu0 0.0
        %384 = vmatprep.subr.mxu0 0.0
        %385 = vmatpush2.msra.mxu0 0.0
        %386 = vmatprep.subr.mxu0 0.0
        %387 = vmatpush2.msra.mxu0 0.0
        %388 = vmatprep.subr.mxu0 0.0
        %389 = vmatpush2.msra.mxu0 0.0
        %390 = vmatprep.subr.mxu0 0.0
        %391 = vmatpush2.msra.mxu0 0.0
        %392 = vmatprep.subr.mxu0 0.0
        %393 = vmatpush2.msra.mxu0 0.0
        %394 = vmatprep.subr.mxu0 0.0
        %395 = vmatpush2.msra.mxu0 0.0
        %396 = vmatprep.subr.mxu0 0.0
        %397 = vmatpush2.msra.mxu0 0.0
        %398 = vmatprep.subr.mxu0 0.0
        %399 = vmatpush2.msra.mxu0 0.0
        %400 = vmatprep.mubr.f32.mxu0 0.0
        %v401 = vand.u32 %v327, 4294901760
        %v402 = vsub.f32 %v327, %v401
        %v403 = vand.u32 %v402, 4294901760
        %v404 = vsub.f32 %v402, %v403
        %v405 = vand.u32 %v404, 4294901760
        %406 = vmatmul.mubr.f32.gmra.mxu0 %v405
        %v407 = vpop.f32.mrf.mxu0
        %v408 = vadd.f32 %v318, %v407
        %v409 = vpop.f32.mrf.mxu0
        %410 = vmatprep.mubr.f32.mxu0 0.0
        %v411 = vand.u32 %v330, 4294901760
        %v412 = vsub.f32 %v330, %v411
        %v413 = vand.u32 %v412, 4294901760
        %v414 = vsub.f32 %v412, %v413
        %v415 = vand.u32 %v414, 4294901760
        %416 = vmatmul.mubr.f32.gmra.mxu0 %v415
        %v417 = vpop.f32.mrf.mxu0
        %v418 = vadd.f32 %v323, %v417
        %v419 = vpop.f32.mrf.mxu0
        %420 = vdwg.mxu0
        %421 = vmatprep.subr.mxu0 0.0
        %422 = vmatpush1.msra.mxu0 0.0
        %423 = vmatprep.subr.mxu0 0.0
        %424 = vmatpush1.msra.mxu0 0.0
        %425 = vmatprep.subr.mxu0 0.0
        %426 = vmatpush1.msra.mxu0 0.0
        %427 = vmatprep.subr.mxu0 0.0
        %428 = vmatpush1.msra.mxu0 0.0
        %429 = vmatprep.subr.mxu0 0.0
        %430 = vmatpush1.msra.mxu0 0.0
        %431 = vmatprep.subr.mxu0 0.0
        %432 = vmatpush1.msra.mxu0 0.0
        %433 = vmatprep.subr.mxu0 0.0
        %434 = vmatpush1.msra.mxu0 0.0
        %435 = vmatprep.subr.mxu0 0.0
        %436 = vmatpush1.msra.mxu0 0.0
        %437 = vmatprep.subr.mxu0 0.0
        %438 = vmatpush1.msra.mxu0 0.0
        %439 = vmatprep.subr.mxu0 0.0
        %440 = vmatpush1.msra.mxu0 0.0
        %441 = vmatprep.subr.mxu0 0.0
        %442 = vmatpush1.msra.mxu0 0.0
        %443 = vmatprep.subr.mxu0 0.0
        %444 = vmatpush1.msra.mxu0 0.0
        %445 = vmatprep.subr.mxu0 0.0
        %v446 = vand.u32 %v310, 4294901760
        %v447 = vsub.f32 %v310, %v446
        %v448 = vand.u32 %v447, 4294901760
        %v449 = vsub.f32 %v447, %v448
        %v450 = vand.u32 %v449, 4294901760
        %451 = vmatpush1.msra.mxu0 %v450
        %452 = vmatprep.subr.mxu0 0.0
        %v453 = vand.u32 %v309, 4294901760
        %v454 = vsub.f32 %v309, %v453
        %v455 = vand.u32 %v454, 4294901760
        %v456 = vsub.f32 %v454, %v455
        %v457 = vand.u32 %v456, 4294901760
        %458 = vmatpush1.msra.mxu0 %v457
        %459 = vmatprep.subr.mxu0 0.0
        %v460 = vand.u32 %v308, 4294901760
        %v461 = vsub.f32 %v308, %v460
        %v462 = vand.u32 %v461, 4294901760
        %v463 = vsub.f32 %v461, %v462
        %v464 = vand.u32 %v463, 4294901760
        %465 = vmatpush1.msra.mxu0 %v464
        %466 = vmatprep.subr.mxu0 0.0
        %v467 = vand.u32 %v307, 4294901760
        %v468 = vsub.f32 %v307, %v467
        %v469 = vand.u32 %v468, 4294901760
        %v470 = vsub.f32 %v468, %v469
        %v471 = vand.u32 %v470, 4294901760
        %472 = vmatpush1.msra.mxu0 %v471
        %473 = vmatprep.subr.mxu0 0.0
        %474 = vmatpush2.msra.mxu0 0.0
        %475 = vmatprep.subr.mxu0 0.0
        %476 = vmatpush2.msra.mxu0 0.0
        %477 = vmatprep.subr.mxu0 0.0
        %478 = vmatpush2.msra.mxu0 0.0
        %479 = vmatprep.subr.mxu0 0.0
        %480 = vmatpush2.msra.mxu0 0.0
        %481 = vmatprep.subr.mxu0 0.0
        %482 = vmatpush2.msra.mxu0 0.0
        %483 = vmatprep.subr.mxu0 0.0
        %484 = vmatpush2.msra.mxu0 0.0
        %485 = vmatprep.subr.mxu0 0.0
        %486 = vmatpush2.msra.mxu0 0.0
        %487 = vmatprep.subr.mxu0 0.0
        %488 = vmatpush2.msra.mxu0 0.0
        %489 = vmatprep.subr.mxu0 0.0
        %490 = vmatpush2.msra.mxu0 0.0
        %491 = vmatprep.subr.mxu0 0.0
        %492 = vmatpush2.msra.mxu0 0.0
        %493 = vmatprep.subr.mxu0 0.0
        %494 = vmatpush2.msra.mxu0 0.0
        %495 = vmatprep.subr.mxu0 0.0
        %496 = vmatpush2.msra.mxu0 0.0
        %497 = vmatprep.subr.mxu0 0.0
        %498 = vmatpush2.msra.mxu0 0.0
        %499 = vmatprep.subr.mxu0 0.0
        %500 = vmatpush2.msra.mxu0 0.0
        %501 = vmatprep.subr.mxu0 0.0
        %502 = vmatpush2.msra.mxu0 0.0
        %503 = vmatprep.subr.mxu0 0.0
        %504 = vmatpush2.msra.mxu0 0.0
        %505 = vmatprep.mubr.f32.mxu0 0.0
        %v506 = vand.u32 %v327, 4294901760
        %507 = vmatmul.mubr.f32.gmra.mxu0 %v506
        %v508 = vpop.f32.mrf.mxu0
        %v509 = vadd.f32 %v408, %v508
        %v510 = vpop.f32.mrf.mxu0
        %511 = vmatprep.mubr.f32.mxu0 0.0
        %v512 = vand.u32 %v330, 4294901760
        %513 = vmatmul.mubr.f32.gmra.mxu0 %v512
        %v514 = vpop.f32.mrf.mxu0
        %v515 = vadd.f32 %v418, %v514
        %v516 = vpop.f32.mrf.mxu0
        %517 = vdwg.mxu0
        %518 = vmatprep.subr.mxu0 0.0
        %519 = vmatpush1.msra.mxu0 0.0
        %520 = vmatprep.subr.mxu0 0.0
        %521 = vmatpush1.msra.mxu0 0.0
        %522 = vmatprep.subr.mxu0 0.0
        %523 = vmatpush1.msra.mxu0 0.0
        %524 = vmatprep.subr.mxu0 0.0
        %525 = vmatpush1.msra.mxu0 0.0
        %526 = vmatprep.subr.mxu0 0.0
        %527 = vmatpush1.msra.mxu0 0.0
        %528 = vmatprep.subr.mxu0 0.0
        %529 = vmatpush1.msra.mxu0 0.0
        %530 = vmatprep.subr.mxu0 0.0
        %531 = vmatpush1.msra.mxu0 0.0
        %532 = vmatprep.subr.mxu0 0.0
        %533 = vmatpush1.msra.mxu0 0.0
        %534 = vmatprep.subr.mxu0 0.0
        %535 = vmatpush1.msra.mxu0 0.0
        %536 = vmatprep.subr.mxu0 0.0
        %537 = vmatpush1.msra.mxu0 0.0
        %538 = vmatprep.subr.mxu0 0.0
        %539 = vmatpush1.msra.mxu0 0.0
        %540 = vmatprep.subr.mxu0 0.0
        %541 = vmatpush1.msra.mxu0 0.0
        %542 = vmatprep.subr.mxu0 0.0
        %v543 = vand.u32 %v310, 4294901760
        %v544 = vsub.f32 %v310, %v543
        %545 = vmatpush1.msra.mxu0 %v544
        %546 = vmatprep.subr.mxu0 0.0
        %v547 = vand.u32 %v309, 4294901760
        %v548 = vsub.f32 %v309, %v547
        %549 = vmatpush1.msra.mxu0 %v548
        %550 = vmatprep.subr.mxu0 0.0
        %v551 = vand.u32 %v308, 4294901760
        %v552 = vsub.f32 %v308, %v551
        %553 = vmatpush1.msra.mxu0 %v552
        %554 = vmatprep.subr.mxu0 0.0
        %v555 = vand.u32 %v307, 4294901760
        %v556 = vsub.f32 %v307, %v555
        %557 = vmatpush1.msra.mxu0 %v556
        %558 = vmatprep.subr.mxu0 0.0
        %559 = vmatpush2.msra.mxu0 0.0
        %560 = vmatprep.subr.mxu0 0.0
        %561 = vmatpush2.msra.mxu0 0.0
        %562 = vmatprep.subr.mxu0 0.0
        %563 = vmatpush2.msra.mxu0 0.0
        %564 = vmatprep.subr.mxu0 0.0
        %565 = vmatpush2.msra.mxu0 0.0
        %566 = vmatprep.subr.mxu0 0.0
        %567 = vmatpush2.msra.mxu0 0.0
        %568 = vmatprep.subr.mxu0 0.0
        %569 = vmatpush2.msra.mxu0 0.0
        %570 = vmatprep.subr.mxu0 0.0
        %571 = vmatpush2.msra.mxu0 0.0
        %572 = vmatprep.subr.mxu0 0.0
        %573 = vmatpush2.msra.mxu0 0.0
        %574 = vmatprep.subr.mxu0 0.0
        %575 = vmatpush2.msra.mxu0 0.0
        %576 = vmatprep.subr.mxu0 0.0
        %577 = vmatpush2.msra.mxu0 0.0
        %578 = vmatprep.subr.mxu0 0.0
        %579 = vmatpush2.msra.mxu0 0.0
        %580 = vmatprep.subr.mxu0 0.0
        %581 = vmatpush2.msra.mxu0 0.0
        %582 = vmatprep.subr.mxu0 0.0
        %583 = vmatpush2.msra.mxu0 0.0
        %584 = vmatprep.subr.mxu0 0.0
        %585 = vmatpush2.msra.mxu0 0.0
        %586 = vmatprep.subr.mxu0 0.0
        %587 = vmatpush2.msra.mxu0 0.0
        %588 = vmatprep.subr.mxu0 0.0
        %589 = vmatpush2.msra.mxu0 0.0
        %590 = vmatprep.mubr.f32.mxu0 0.0
        %v591 = vand.u32 %v327, 4294901760
        %v592 = vsub.f32 %v327, %v591
        %593 = vmatmul.mubr.f32.gmra.mxu0 %v592
        %v594 = vpop.f32.mrf.mxu0
        %v595 = vadd.f32 %v509, %v594
        %v596 = vpop.f32.mrf.mxu0
        %597 = vmatprep.mubr.f32.mxu0 0.0
        %v598 = vand.u32 %v330, 4294901760
        %v599 = vsub.f32 %v330, %v598
        %600 = vmatmul.mubr.f32.gmra.mxu0 %v599
        %v601 = vpop.f32.mrf.mxu0
        %v602 = vadd.f32 %v515, %v601
        %v603 = vpop.f32.mrf.mxu0
        %604 = vdwg.mxu0
        %605 = vmatprep.subr.mxu0 0.0
        %606 = vmatpush1.msra.mxu0 0.0
        %607 = vmatprep.subr.mxu0 0.0
        %608 = vmatpush1.msra.mxu0 0.0
        %609 = vmatprep.subr.mxu0 0.0
        %610 = vmatpush1.msra.mxu0 0.0
        %611 = vmatprep.subr.mxu0 0.0
        %612 = vmatpush1.msra.mxu0 0.0
        %613 = vmatprep.subr.mxu0 0.0
        %614 = vmatpush1.msra.mxu0 0.0
        %615 = vmatprep.subr.mxu0 0.0
        %616 = vmatpush1.msra.mxu0 0.0
        %617 = vmatprep.subr.mxu0 0.0
        %618 = vmatpush1.msra.mxu0 0.0
        %619 = vmatprep.subr.mxu0 0.0
        %620 = vmatpush1.msra.mxu0 0.0
        %621 = vmatprep.subr.mxu0 0.0
        %622 = vmatpush1.msra.mxu0 0.0
        %623 = vmatprep.subr.mxu0 0.0
        %624 = vmatpush1.msra.mxu0 0.0
        %625 = vmatprep.subr.mxu0 0.0
        %626 = vmatpush1.msra.mxu0 0.0
        %627 = vmatprep.subr.mxu0 0.0
        %628 = vmatpush1.msra.mxu0 0.0
        %629 = vmatprep.subr.mxu0 0.0
        %v630 = vand.u32 %v310, 4294901760
        %631 = vmatpush1.msra.mxu0 %v630
        %632 = vmatprep.subr.mxu0 0.0
        %v633 = vand.u32 %v309, 4294901760
        %634 = vmatpush1.msra.mxu0 %v633
        %635 = vmatprep.subr.mxu0 0.0
        %v636 = vand.u32 %v308, 4294901760
        %637 = vmatpush1.msra.mxu0 %v636
        %638 = vmatprep.subr.mxu0 0.0
        %v639 = vand.u32 %v307, 4294901760
        %640 = vmatpush1.msra.mxu0 %v639
        %641 = vmatprep.subr.mxu0 0.0
        %642 = vmatpush2.msra.mxu0 0.0
        %643 = vmatprep.subr.mxu0 0.0
        %644 = vmatpush2.msra.mxu0 0.0
        %645 = vmatprep.subr.mxu0 0.0
        %646 = vmatpush2.msra.mxu0 0.0
        %647 = vmatprep.subr.mxu0 0.0
        %648 = vmatpush2.msra.mxu0 0.0
        %649 = vmatprep.subr.mxu0 0.0
        %650 = vmatpush2.msra.mxu0 0.0
        %651 = vmatprep.subr.mxu0 0.0
        %652 = vmatpush2.msra.mxu0 0.0
        %653 = vmatprep.subr.mxu0 0.0
        %654 = vmatpush2.msra.mxu0 0.0
        %655 = vmatprep.subr.mxu0 0.0
        %656 = vmatpush2.msra.mxu0 0.0
        %657 = vmatprep.subr.mxu0 0.0
        %658 = vmatpush2.msra.mxu0 0.0
        %659 = vmatprep.subr.mxu0 0.0
        %660 = vmatpush2.msra.mxu0 0.0
        %661 = vmatprep.subr.mxu0 0.0
        %662 = vmatpush2.msra.mxu0 0.0
        %663 = vmatprep.subr.mxu0 0.0
        %664 = vmatpush2.msra.mxu0 0.0
        %665 = vmatprep.subr.mxu0 0.0
        %666 = vmatpush2.msra.mxu0 0.0
        %667 = vmatprep.subr.mxu0 0.0
        %668 = vmatpush2.msra.mxu0 0.0
        %669 = vmatprep.subr.mxu0 0.0
        %670 = vmatpush2.msra.mxu0 0.0
        %671 = vmatprep.subr.mxu0 0.0
        %672 = vmatpush2.msra.mxu0 0.0
        %673 = vmatprep.mubr.f32.mxu0 0.0
        %v674 = vand.u32 %v327, 4294901760
        %v675 = vsub.f32 %v327, %v674
        %v676 = vand.u32 %v675, 4294901760
        %677 = vmatmul.mubr.f32.gmra.mxu0 %v676
        %v678 = vpop.f32.mrf.mxu0
        %v679 = vadd.f32 %v595, %v678
        %v680 = vpop.f32.mrf.mxu0
        %681 = vmatprep.mubr.f32.mxu0 0.0
        %v682 = vand.u32 %v330, 4294901760
        %v683 = vsub.f32 %v330, %v682
        %v684 = vand.u32 %v683, 4294901760
        %685 = vmatmul.mubr.f32.gmra.mxu0 %v684
        %v686 = vpop.f32.mrf.mxu0
        %v687 = vadd.f32 %v602, %v686
        %v688 = vpop.f32.mrf.mxu0
        %689 = vdwg.mxu0
        %690 = vmatprep.subr.mxu0 0.0
        %691 = vmatpush1.msra.mxu0 0.0
        %692 = vmatprep.subr.mxu0 0.0
        %693 = vmatpush1.msra.mxu0 0.0
        %694 = vmatprep.subr.mxu0 0.0
        %695 = vmatpush1.msra.mxu0 0.0
        %696 = vmatprep.subr.mxu0 0.0
        %697 = vmatpush1.msra.mxu0 0.0
        %698 = vmatprep.subr.mxu0 0.0
        %699 = vmatpush1.msra.mxu0 0.0
        %700 = vmatprep.subr.mxu0 0.0
        %701 = vmatpush1.msra.mxu0 0.0
        %702 = vmatprep.subr.mxu0 0.0
        %703 = vmatpush1.msra.mxu0 0.0
        %704 = vmatprep.subr.mxu0 0.0
        %705 = vmatpush1.msra.mxu0 0.0
        %706 = vmatprep.subr.mxu0 0.0
        %707 = vmatpush1.msra.mxu0 0.0
        %708 = vmatprep.subr.mxu0 0.0
        %709 = vmatpush1.msra.mxu0 0.0
        %710 = vmatprep.subr.mxu0 0.0
        %711 = vmatpush1.msra.mxu0 0.0
        %712 = vmatprep.subr.mxu0 0.0
        %713 = vmatpush1.msra.mxu0 0.0
        %714 = vmatprep.subr.mxu0 0.0
        %v715 = vand.u32 %v310, 4294901760
        %v716 = vsub.f32 %v310, %v715
        %v717 = vand.u32 %v716, 4294901760
        %718 = vmatpush1.msra.mxu0 %v717
        %719 = vmatprep.subr.mxu0 0.0
        %v720 = vand.u32 %v309, 4294901760
        %v721 = vsub.f32 %v309, %v720
        %v722 = vand.u32 %v721, 4294901760
        %723 = vmatpush1.msra.mxu0 %v722
        %724 = vmatprep.subr.mxu0 0.0
        %v725 = vand.u32 %v308, 4294901760
        %v726 = vsub.f32 %v308, %v725
        %v727 = vand.u32 %v726, 4294901760
        %728 = vmatpush1.msra.mxu0 %v727
        %729 = vmatprep.subr.mxu0 0.0
        %v730 = vand.u32 %v307, 4294901760
        %v731 = vsub.f32 %v307, %v730
        %v732 = vand.u32 %v731, 4294901760
        %733 = vmatpush1.msra.mxu0 %v732
        %734 = vmatprep.subr.mxu0 0.0
        %735 = vmatpush2.msra.mxu0 0.0
        %736 = vmatprep.subr.mxu0 0.0
        %737 = vmatpush2.msra.mxu0 0.0
        %738 = vmatprep.subr.mxu0 0.0
        %739 = vmatpush2.msra.mxu0 0.0
        %740 = vmatprep.subr.mxu0 0.0
        %741 = vmatpush2.msra.mxu0 0.0
        %742 = vmatprep.subr.mxu0 0.0
        %743 = vmatpush2.msra.mxu0 0.0
        %744 = vmatprep.subr.mxu0 0.0
        %745 = vmatpush2.msra.mxu0 0.0
        %746 = vmatprep.subr.mxu0 0.0
        %747 = vmatpush2.msra.mxu0 0.0
        %748 = vmatprep.subr.mxu0 0.0
        %749 = vmatpush2.msra.mxu0 0.0
        %750 = vmatprep.subr.mxu0 0.0
        %751 = vmatpush2.msra.mxu0 0.0
        %752 = vmatprep.subr.mxu0 0.0
        %753 = vmatpush2.msra.mxu0 0.0
        %754 = vmatprep.subr.mxu0 0.0
        %755 = vmatpush2.msra.mxu0 0.0
        %756 = vmatprep.subr.mxu0 0.0
        %757 = vmatpush2.msra.mxu0 0.0
        %758 = vmatprep.subr.mxu0 0.0
        %759 = vmatpush2.msra.mxu0 0.0
        %760 = vmatprep.subr.mxu0 0.0
        %761 = vmatpush2.msra.mxu0 0.0
        %762 = vmatprep.subr.mxu0 0.0
        %763 = vmatpush2.msra.mxu0 0.0
        %764 = vmatprep.subr.mxu0 0.0
        %765 = vmatpush2.msra.mxu0 0.0
        %766 = vmatprep.mubr.f32.mxu0 0.0
        %v767 = vand.u32 %v327, 4294901760
        %768 = vmatmul.mubr.f32.gmra.mxu0 %v767
        %v769 = vpop.f32.mrf.mxu0
        %v770 = vadd.f32 %v679, %v769
        %v771 = vpop.f32.mrf.mxu0
        %772 = vmatprep.mubr.f32.mxu0 0.0
        %v773 = vand.u32 %v330, 4294901760
        %774 = vmatmul.mubr.f32.gmra.mxu0 %v773
        %v775 = vpop.f32.mrf.mxu0
        %v776 = vadd.f32 %v687, %v775
        %v777 = vpop.f32.mrf.mxu0
        %778 = vdwg.mxu0
        %779 = vmatprep.subr.mxu0 0.0
        %780 = vmatpush1.msra.mxu0 0.0
        %781 = vmatprep.subr.mxu0 0.0
        %782 = vmatpush1.msra.mxu0 0.0
        %783 = vmatprep.subr.mxu0 0.0
        %784 = vmatpush1.msra.mxu0 0.0
        %785 = vmatprep.subr.mxu0 0.0
        %786 = vmatpush1.msra.mxu0 0.0
        %787 = vmatprep.subr.mxu0 0.0
        %788 = vmatpush1.msra.mxu0 0.0
        %789 = vmatprep.subr.mxu0 0.0
        %790 = vmatpush1.msra.mxu0 0.0
        %791 = vmatprep.subr.mxu0 0.0
        %792 = vmatpush1.msra.mxu0 0.0
        %793 = vmatprep.subr.mxu0 0.0
        %794 = vmatpush1.msra.mxu0 0.0
        %795 = vmatprep.subr.mxu0 0.0
        %796 = vmatpush1.msra.mxu0 0.0
        %797 = vmatprep.subr.mxu0 0.0
        %798 = vmatpush1.msra.mxu0 0.0
        %799 = vmatprep.subr.mxu0 0.0
        %800 = vmatpush1.msra.mxu0 0.0
        %801 = vmatprep.subr.mxu0 0.0
        %802 = vmatpush1.msra.mxu0 0.0
        %803 = vmatprep.subr.mxu0 0.0
        %v804 = vand.u32 %v310, 4294901760
        %805 = vmatpush1.msra.mxu0 %v804
        %806 = vmatprep.subr.mxu0 0.0
        %v807 = vand.u32 %v309, 4294901760
        %808 = vmatpush1.msra.mxu0 %v807
        %809 = vmatprep.subr.mxu0 0.0
        %v810 = vand.u32 %v308, 4294901760
        %811 = vmatpush1.msra.mxu0 %v810
        %812 = vmatprep.subr.mxu0 0.0
        %v813 = vand.u32 %v307, 4294901760
        %814 = vmatpush1.msra.mxu0 %v813
        %815 = vmatprep.subr.mxu0 0.0
        %816 = vmatpush2.msra.mxu0 0.0
        %817 = vmatprep.subr.mxu0 0.0
        %818 = vmatpush2.msra.mxu0 0.0
        %819 = vmatprep.subr.mxu0 0.0
        %820 = vmatpush2.msra.mxu0 0.0
        %821 = vmatprep.subr.mxu0 0.0
        %822 = vmatpush2.msra.mxu0 0.0
        %823 = vmatprep.subr.mxu0 0.0
        %824 = vmatpush2.msra.mxu0 0.0
        %825 = vmatprep.subr.mxu0 0.0
        %826 = vmatpush2.msra.mxu0 0.0
        %827 = vmatprep.subr.mxu0 0.0
        %828 = vmatpush2.msra.mxu0 0.0
        %829 = vmatprep.subr.mxu0 0.0
        %830 = vmatpush2.msra.mxu0 0.0
        %831 = vmatprep.subr.mxu0 0.0
        %832 = vmatpush2.msra.mxu0 0.0
        %833 = vmatprep.subr.mxu0 0.0
        %834 = vmatpush2.msra.mxu0 0.0
        %835 = vmatprep.subr.mxu0 0.0
        %836 = vmatpush2.msra.mxu0 0.0
        %837 = vmatprep.subr.mxu0 0.0
        %838 = vmatpush2.msra.mxu0 0.0
        %839 = vmatprep.subr.mxu0 0.0
        %840 = vmatpush2.msra.mxu0 0.0
        %841 = vmatprep.subr.mxu0 0.0
        %842 = vmatpush2.msra.mxu0 0.0
        %843 = vmatprep.subr.mxu0 0.0
        %844 = vmatpush2.msra.mxu0 0.0
        %845 = vmatprep.subr.mxu0 0.0
        %846 = vmatpush2.msra.mxu0 0.0
        %847 = vmatprep.mubr.f32.mxu0 0.0
        %v848 = vand.u32 %v327, 4294901760
        %849 = vmatmul.mubr.f32.gmra.mxu0 %v848
        %v850 = vpop.f32.mrf.mxu0
        %v851 = vadd.f32 %v770, %v850
        %v852 = vpop.f32.mrf.mxu0
        %853 = vmatprep.mubr.f32.mxu0 0.0
        %v854 = vand.u32 %v330, 4294901760
        %855 = vmatmul.mubr.f32.gmra.mxu0 %v854
        %v856 = vpop.f32.mrf.mxu0
        %v857 = vadd.f32 %v776, %v856
        %v858 = vpop.f32.mrf.mxu0
        %859 = vdwg.mxu0
        %v860 = vmax.f32 %v851, 0.0
        %v861 = vmax.f32 %v857, 0.0
        %v862 = vld [vmem:[%s3] sm:$0x7]
        %v863 = vld [vmem:[%s4] sm:$0x7]
        %865 = vset.pattern.permute.xlu0 0
        %866 = vperm.xlu0 %865, %v863
        %v867 = vpop.permute.xlu0 %866
        %vm869 = vcmask 130048
        %v871 = vsel %vm869, %v862, 0
        %873 = vmatprep.subr.mxu0 0.0
        %874 = vmatpush1.msra.mxu0 0.0
        %875 = vmatprep.subr.mxu0 0.0
        %876 = vmatpush1.msra.mxu0 0.0
        %877 = vmatprep.subr.mxu0 0.0
        %878 = vmatpush1.msra.mxu0 0.0
        %879 = vmatprep.subr.mxu0 0.0
        %880 = vmatpush1.msra.mxu0 0.0
        %881 = vmatprep.subr.mxu0 0.0
        %882 = vmatpush1.msra.mxu0 0.0
        %883 = vmatprep.subr.mxu0 0.0
        %884 = vmatpush1.msra.mxu0 0.0
        %885 = vmatprep.subr.mxu0 0.0
        %886 = vmatpush1.msra.mxu0 0.0
        %887 = vmatprep.subr.mxu0 0.0
        %888 = vmatpush1.msra.mxu0 0.0
        %889 = vmatprep.subr.mxu0 0.0
        %890 = vmatpush1.msra.mxu0 0.0
        %891 = vmatprep.subr.mxu0 0.0
        %892 = vmatpush1.msra.mxu0 0.0
        %893 = vmatprep.subr.mxu0 0.0
        %894 = vmatpush1.msra.mxu0 0.0
        %895 = vmatprep.subr.mxu0 0.0
        %896 = vmatpush1.msra.mxu0 0.0
        %897 = vmatprep.subr.mxu0 0.0
        %898 = vmatpush1.msra.mxu0 0.0
        %899 = vmatprep.subr.mxu0 0.0
        %900 = vmatpush1.msra.mxu0 0.0
        %901 = vmatprep.subr.mxu0 0.0
        %v902 = vand.u32 %v861, 4294901760
        %903 = vmatpush1.msra.mxu0 %v902
        %904 = vmatprep.subr.mxu0 0.0
        %v905 = vand.u32 %v860, 4294901760
        %906 = vmatpush1.msra.mxu0 %v905
        %907 = vmatprep.subr.mxu0 0.0
        %908 = vmatpush2.msra.mxu0 0.0
        %909 = vmatprep.subr.mxu0 0.0
        %910 = vmatpush2.msra.mxu0 0.0
        %911 = vmatprep.subr.mxu0 0.0
        %912 = vmatpush2.msra.mxu0 0.0
        %913 = vmatprep.subr.mxu0 0.0
        %914 = vmatpush2.msra.mxu0 0.0
        %915 = vmatprep.subr.mxu0 0.0
        %916 = vmatpush2.msra.mxu0 0.0
        %917 = vmatprep.subr.mxu0 0.0
        %918 = vmatpush2.msra.mxu0 0.0
        %919 = vmatprep.subr.mxu0 0.0
        %920 = vmatpush2.msra.mxu0 0.0
        %921 = vmatprep.subr.mxu0 0.0
        %922 = vmatpush2.msra.mxu0 0.0
        %923 = vmatprep.subr.mxu0 0.0
        %924 = vmatpush2.msra.mxu0 0.0
        %925 = vmatprep.subr.mxu0 0.0
        %926 = vmatpush2.msra.mxu0 0.0
        %927 = vmatprep.subr.mxu0 0.0
        %928 = vmatpush2.msra.mxu0 0.0
        %929 = vmatprep.subr.mxu0 0.0
        %930 = vmatpush2.msra.mxu0 0.0
        %931 = vmatprep.subr.mxu0 0.0
        %932 = vmatpush2.msra.mxu0 0.0
        %933 = vmatprep.subr.mxu0 0.0
        %934 = vmatpush2.msra.mxu0 0.0
        %935 = vmatprep.subr.mxu0 0.0
        %936 = vmatpush2.msra.mxu0 0.0
        %937 = vmatprep.subr.mxu0 0.0
        %938 = vmatpush2.msra.mxu0 0.0
        %939 = vmatprep.mubr.f32.mxu0 0.0
        %v940 = vand.u32 %v871, 4294901760
        %v941 = vsub.f32 %v871, %v940
        %v942 = vand.u32 %v941, 4294901760
        %v943 = vsub.f32 %v941, %v942
        %v944 = vand.u32 %v943, 4294901760
        %945 = vmatmul.mubr.f32.gmra.mxu0 %v944
        %v946 = vpop.f32.mrf.mxu0
        %v947 = vadd.f32 %v867, %v946
        %v948 = vpop.f32.mrf.mxu0
        %949 = vdwg.mxu0
        %950 = vmatprep.subr.mxu0 0.0
        %951 = vmatpush1.msra.mxu0 0.0
        %952 = vmatprep.subr.mxu0 0.0
        %953 = vmatpush1.msra.mxu0 0.0
        %954 = vmatprep.subr.mxu0 0.0
        %955 = vmatpush1.msra.mxu0 0.0
        %956 = vmatprep.subr.mxu0 0.0
        %957 = vmatpush1.msra.mxu0 0.0
        %958 = vmatprep.subr.mxu0 0.0
        %959 = vmatpush1.msra.mxu0 0.0
        %960 = vmatprep.subr.mxu0 0.0
        %961 = vmatpush1.msra.mxu0 0.0
        %962 = vmatprep.subr.mxu0 0.0
        %963 = vmatpush1.msra.mxu0 0.0
        %964 = vmatprep.subr.mxu0 0.0
        %965 = vmatpush1.msra.mxu0 0.0
        %966 = vmatprep.subr.mxu0 0.0
        %967 = vmatpush1.msra.mxu0 0.0
        %968 = vmatprep.subr.mxu0 0.0
        %969 = vmatpush1.msra.mxu0 0.0
        %970 = vmatprep.subr.mxu0 0.0
        %971 = vmatpush1.msra.mxu0 0.0
        %972 = vmatprep.subr.mxu0 0.0
        %973 = vmatpush1.msra.mxu0 0.0
        %974 = vmatprep.subr.mxu0 0.0
        %975 = vmatpush1.msra.mxu0 0.0
        %976 = vmatprep.subr.mxu0 0.0
        %977 = vmatpush1.msra.mxu0 0.0
        %978 = vmatprep.subr.mxu0 0.0
        %v979 = vand.u32 %v861, 4294901760
        %v980 = vsub.f32 %v861, %v979
        %v981 = vand.u32 %v980, 4294901760
        %v982 = vsub.f32 %v980, %v981
        %v983 = vand.u32 %v982, 4294901760
        %984 = vmatpush1.msra.mxu0 %v983
        %985 = vmatprep.subr.mxu0 0.0
        %v986 = vand.u32 %v860, 4294901760
        %v987 = vsub.f32 %v860, %v986
        %v988 = vand.u32 %v987, 4294901760
        %v989 = vsub.f32 %v987, %v988
        %v990 = vand.u32 %v989, 4294901760
        %991 = vmatpush1.msra.mxu0 %v990
        %992 = vmatprep.subr.mxu0 0.0
        %993 = vmatpush2.msra.mxu0 0.0
        %994 = vmatprep.subr.mxu0 0.0
        %995 = vmatpush2.msra.mxu0 0.0
        %996 = vmatprep.subr.mxu0 0.0
        %997 = vmatpush2.msra.mxu0 0.0
        %998 = vmatprep.subr.mxu0 0.0
        %999 = vmatpush2.msra.mxu0 0.0
        %1000 = vmatprep.subr.mxu0 0.0
        %1001 = vmatpush2.msra.mxu0 0.0
        %1002 = vmatprep.subr.mxu0 0.0
        %1003 = vmatpush2.msra.mxu0 0.0
        %1004 = vmatprep.subr.mxu0 0.0
        %1005 = vmatpush2.msra.mxu0 0.0
        %1006 = vmatprep.subr.mxu0 0.0
        %1007 = vmatpush2.msra.mxu0 0.0
        %1008 = vmatprep.subr.mxu0 0.0
        %1009 = vmatpush2.msra.mxu0 0.0
        %1010 = vmatprep.subr.mxu0 0.0
        %1011 = vmatpush2.msra.mxu0 0.0
        %1012 = vmatprep.subr.mxu0 0.0
        %1013 = vmatpush2.msra.mxu0 0.0
        %1014 = vmatprep.subr.mxu0 0.0
        %1015 = vmatpush2.msra.mxu0 0.0
        %1016 = vmatprep.subr.mxu0 0.0
        %1017 = vmatpush2.msra.mxu0 0.0
        %1018 = vmatprep.subr.mxu0 0.0
        %1019 = vmatpush2.msra.mxu0 0.0
        %1020 = vmatprep.subr.mxu0 0.0
        %1021 = vmatpush2.msra.mxu0 0.0
        %1022 = vmatprep.subr.mxu0 0.0
        %1023 = vmatpush2.msra.mxu0 0.0
        %1024 = vmatprep.mubr.f32.mxu0 0.0
        %v1025 = vand.u32 %v871, 4294901760
        %1026 = vmatmul.mubr.f32.gmra.mxu0 %v1025
        %v1027 = vpop.f32.mrf.mxu0
        %v1028 = vadd.f32 %v947, %v1027
        %v1029 = vpop.f32.mrf.mxu0
        %1030 = vdwg.mxu0
        %1031 = vmatprep.subr.mxu0 0.0
        %1032 = vmatpush1.msra.mxu0 0.0
        %1033 = vmatprep.subr.mxu0 0.0
        %1034 = vmatpush1.msra.mxu0 0.0
        %1035 = vmatprep.subr.mxu0 0.0
        %1036 = vmatpush1.msra.mxu0 0.0
        %1037 = vmatprep.subr.mxu0 0.0
        %1038 = vmatpush1.msra.mxu0 0.0
        %1039 = vmatprep.subr.mxu0 0.0
        %1040 = vmatpush1.msra.mxu0 0.0
        %1041 = vmatprep.subr.mxu0 0.0
        %1042 = vmatpush1.msra.mxu0 0.0
        %1043 = vmatprep.subr.mxu0 0.0
        %1044 = vmatpush1.msra.mxu0 0.0
        %1045 = vmatprep.subr.mxu0 0.0
        %1046 = vmatpush1.msra.mxu0 0.0
        %1047 = vmatprep.subr.mxu0 0.0
        %1048 = vmatpush1.msra.mxu0 0.0
        %1049 = vmatprep.subr.mxu0 0.0
        %1050 = vmatpush1.msra.mxu0 0.0
        %1051 = vmatprep.subr.mxu0 0.0
        %1052 = vmatpush1.msra.mxu0 0.0
        %1053 = vmatprep.subr.mxu0 0.0
        %1054 = vmatpush1.msra.mxu0 0.0
        %1055 = vmatprep.subr.mxu0 0.0
        %1056 = vmatpush1.msra.mxu0 0.0
        %1057 = vmatprep.subr.mxu0 0.0
        %1058 = vmatpush1.msra.mxu0 0.0
        %1059 = vmatprep.subr.mxu0 0.0
        %v1060 = vand.u32 %v861, 4294901760
        %v1061 = vsub.f32 %v861, %v1060
        %1062 = vmatpush1.msra.mxu0 %v1061
        %1063 = vmatprep.subr.mxu0 0.0
        %v1064 = vand.u32 %v860, 4294901760
        %v1065 = vsub.f32 %v860, %v1064
        %1066 = vmatpush1.msra.mxu0 %v1065
        %1067 = vmatprep.subr.mxu0 0.0
        %1068 = vmatpush2.msra.mxu0 0.0
        %1069 = vmatprep.subr.mxu0 0.0
        %1070 = vmatpush2.msra.mxu0 0.0
        %1071 = vmatprep.subr.mxu0 0.0
        %1072 = vmatpush2.msra.mxu0 0.0
        %1073 = vmatprep.subr.mxu0 0.0
        %1074 = vmatpush2.msra.mxu0 0.0
        %1075 = vmatprep.subr.mxu0 0.0
        %1076 = vmatpush2.msra.mxu0 0.0
        %1077 = vmatprep.subr.mxu0 0.0
        %1078 = vmatpush2.msra.mxu0 0.0
        %1079 = vmatprep.subr.mxu0 0.0
        %1080 = vmatpush2.msra.mxu0 0.0
        %1081 = vmatprep.subr.mxu0 0.0
        %1082 = vmatpush2.msra.mxu0 0.0
        %1083 = vmatprep.subr.mxu0 0.0
        %1084 = vmatpush2.msra.mxu0 0.0
        %1085 = vmatprep.subr.mxu0 0.0
        %1086 = vmatpush2.msra.mxu0 0.0
        %1087 = vmatprep.subr.mxu0 0.0
        %1088 = vmatpush2.msra.mxu0 0.0
        %1089 = vmatprep.subr.mxu0 0.0
        %1090 = vmatpush2.msra.mxu0 0.0
        %1091 = vmatprep.subr.mxu0 0.0
        %1092 = vmatpush2.msra.mxu0 0.0
        %1093 = vmatprep.subr.mxu0 0.0
        %1094 = vmatpush2.msra.mxu0 0.0
        %1095 = vmatprep.subr.mxu0 0.0
        %1096 = vmatpush2.msra.mxu0 0.0
        %1097 = vmatprep.subr.mxu0 0.0
        %1098 = vmatpush2.msra.mxu0 0.0
        %1099 = vmatprep.mubr.f32.mxu0 0.0
        %v1100 = vand.u32 %v871, 4294901760
        %v1101 = vsub.f32 %v871, %v1100
        %1102 = vmatmul.mubr.f32.gmra.mxu0 %v1101
        %v1103 = vpop.f32.mrf.mxu0
        %v1104 = vadd.f32 %v1028, %v1103
        %v1105 = vpop.f32.mrf.mxu0
        %1106 = vdwg.mxu0
        %1107 = vmatprep.subr.mxu0 0.0
        %1108 = vmatpush1.msra.mxu0 0.0
        %1109 = vmatprep.subr.mxu0 0.0
        %1110 = vmatpush1.msra.mxu0 0.0
        %1111 = vmatprep.subr.mxu0 0.0
        %1112 = vmatpush1.msra.mxu0 0.0
        %1113 = vmatprep.subr.mxu0 0.0
        %1114 = vmatpush1.msra.mxu0 0.0
        %1115 = vmatprep.subr.mxu0 0.0
        %1116 = vmatpush1.msra.mxu0 0.0
        %1117 = vmatprep.subr.mxu0 0.0
        %1118 = vmatpush1.msra.mxu0 0.0
        %1119 = vmatprep.subr.mxu0 0.0
        %1120 = vmatpush1.msra.mxu0 0.0
        %1121 = vmatprep.subr.mxu0 0.0
        %1122 = vmatpush1.msra.mxu0 0.0
        %1123 = vmatprep.subr.mxu0 0.0
        %1124 = vmatpush1.msra.mxu0 0.0
        %1125 = vmatprep.subr.mxu0 0.0
        %1126 = vmatpush1.msra.mxu0 0.0
        %1127 = vmatprep.subr.mxu0 0.0
        %1128 = vmatpush1.msra.mxu0 0.0
        %1129 = vmatprep.subr.mxu0 0.0
        %1130 = vmatpush1.msra.mxu0 0.0
        %1131 = vmatprep.subr.mxu0 0.0
        %1132 = vmatpush1.msra.mxu0 0.0
        %1133 = vmatprep.subr.mxu0 0.0
        %1134 = vmatpush1.msra.mxu0 0.0
        %1135 = vmatprep.subr.mxu0 0.0
        %v1136 = vand.u32 %v861, 4294901760
        %1137 = vmatpush1.msra.mxu0 %v1136
        %1138 = vmatprep.subr.mxu0 0.0
        %v1139 = vand.u32 %v860, 4294901760
        %1140 = vmatpush1.msra.mxu0 %v1139
        %1141 = vmatprep.subr.mxu0 0.0
        %1142 = vmatpush2.msra.mxu0 0.0
        %1143 = vmatprep.subr.mxu0 0.0
        %1144 = vmatpush2.msra.mxu0 0.0
        %1145 = vmatprep.subr.mxu0 0.0
        %1146 = vmatpush2.msra.mxu0 0.0
        %1147 = vmatprep.subr.mxu0 0.0
        %1148 = vmatpush2.msra.mxu0 0.0
        %1149 = vmatprep.subr.mxu0 0.0
        %1150 = vmatpush2.msra.mxu0 0.0
        %1151 = vmatprep.subr.mxu0 0.0
        %1152 = vmatpush2.msra.mxu0 0.0
        %1153 = vmatprep.subr.mxu0 0.0
        %1154 = vmatpush2.msra.mxu0 0.0
        %1155 = vmatprep.subr.mxu0 0.0
        %1156 = vmatpush2.msra.mxu0 0.0
        %1157 = vmatprep.subr.mxu0 0.0
        %1158 = vmatpush2.msra.mxu0 0.0
        %1159 = vmatprep.subr.mxu0 0.0
        %1160 = vmatpush2.msra.mxu0 0.0
        %1161 = vmatprep.subr.mxu0 0.0
        %1162 = vmatpush2.msra.mxu0 0.0
        %1163 = vmatprep.subr.mxu0 0.0
        %1164 = vmatpush2.msra.mxu0 0.0
        %1165 = vmatprep.subr.mxu0 0.0
        %1166 = vmatpush2.msra.mxu0 0.0
        %1167 = vmatprep.subr.mxu0 0.0
        %1168 = vmatpush2.msra.mxu0 0.0
        %1169 = vmatprep.subr.mxu0 0.0
        %1170 = vmatpush2.msra.mxu0 0.0
        %1171 = vmatprep.subr.mxu0 0.0
        %1172 = vmatpush2.msra.mxu0 0.0
        %1173 = vmatprep.mubr.f32.mxu0 0.0
        %v1174 = vand.u32 %v871, 4294901760
        %v1175 = vsub.f32 %v871, %v1174
        %v1176 = vand.u32 %v1175, 4294901760
        %1177 = vmatmul.mubr.f32.gmra.mxu0 %v1176
        %v1178 = vpop.f32.mrf.mxu0
        %v1179 = vadd.f32 %v1104, %v1178
        %v1180 = vpop.f32.mrf.mxu0
        %1181 = vdwg.mxu0
        %1182 = vmatprep.subr.mxu0 0.0
        %1183 = vmatpush1.msra.mxu0 0.0
        %1184 = vmatprep.subr.mxu0 0.0
        %1185 = vmatpush1.msra.mxu0 0.0
        %1186 = vmatprep.subr.mxu0 0.0
        %1187 = vmatpush1.msra.mxu0 0.0
        %1188 = vmatprep.subr.mxu0 0.0
        %1189 = vmatpush1.msra.mxu0 0.0
        %1190 = vmatprep.subr.mxu0 0.0
        %1191 = vmatpush1.msra.mxu0 0.0
        %1192 = vmatprep.subr.mxu0 0.0
        %1193 = vmatpush1.msra.mxu0 0.0
        %1194 = vmatprep.subr.mxu0 0.0
        %1195 = vmatpush1.msra.mxu0 0.0
        %1196 = vmatprep.subr.mxu0 0.0
        %1197 = vmatpush1.msra.mxu0 0.0
        %1198 = vmatprep.subr.mxu0 0.0
        %1199 = vmatpush1.msra.mxu0 0.0
        %1200 = vmatprep.subr.mxu0 0.0
        %1201 = vmatpush1.msra.mxu0 0.0
        %1202 = vmatprep.subr.mxu0 0.0
        %1203 = vmatpush1.msra.mxu0 0.0
        %1204 = vmatprep.subr.mxu0 0.0
        %1205 = vmatpush1.msra.mxu0 0.0
        %1206 = vmatprep.subr.mxu0 0.0
        %1207 = vmatpush1.msra.mxu0 0.0
        %1208 = vmatprep.subr.mxu0 0.0
        %1209 = vmatpush1.msra.mxu0 0.0
        %1210 = vmatprep.subr.mxu0 0.0
        %v1211 = vand.u32 %v861, 4294901760
        %v1212 = vsub.f32 %v861, %v1211
        %v1213 = vand.u32 %v1212, 4294901760
        %1214 = vmatpush1.msra.mxu0 %v1213
        %1215 = vmatprep.subr.mxu0 0.0
        %v1216 = vand.u32 %v860, 4294901760
        %v1217 = vsub.f32 %v860, %v1216
        %v1218 = vand.u32 %v1217, 4294901760
        %1219 = vmatpush1.msra.mxu0 %v1218
        %1220 = vmatprep.subr.mxu0 0.0
        %1221 = vmatpush2.msra.mxu0 0.0
        %1222 = vmatprep.subr.mxu0 0.0
        %1223 = vmatpush2.msra.mxu0 0.0
        %1224 = vmatprep.subr.mxu0 0.0
        %1225 = vmatpush2.msra.mxu0 0.0
        %1226 = vmatprep.subr.mxu0 0.0
        %1227 = vmatpush2.msra.mxu0 0.0
        %1228 = vmatprep.subr.mxu0 0.0
        %1229 = vmatpush2.msra.mxu0 0.0
        %1230 = vmatprep.subr.mxu0 0.0
        %1231 = vmatpush2.msra.mxu0 0.0
        %1232 = vmatprep.subr.mxu0 0.0
        %1233 = vmatpush2.msra.mxu0 0.0
        %1234 = vmatprep.subr.mxu0 0.0
        %1235 = vmatpush2.msra.mxu0 0.0
        %1236 = vmatprep.subr.mxu0 0.0
        %1237 = vmatpush2.msra.mxu0 0.0
        %1238 = vmatprep.subr.mxu0 0.0
        %1239 = vmatpush2.msra.mxu0 0.0
        %1240 = vmatprep.subr.mxu0 0.0
        %1241 = vmatpush2.msra.mxu0 0.0
        %1242 = vmatprep.subr.mxu0 0.0
        %1243 = vmatpush2.msra.mxu0 0.0
        %1244 = vmatprep.subr.mxu0 0.0
        %1245 = vmatpush2.msra.mxu0 0.0
        %1246 = vmatprep.subr.mxu0 0.0
        %1247 = vmatpush2.msra.mxu0 0.0
        %1248 = vmatprep.subr.mxu0 0.0
        %1249 = vmatpush2.msra.mxu0 0.0
        %1250 = vmatprep.subr.mxu0 0.0
        %1251 = vmatpush2.msra.mxu0 0.0
        %1252 = vmatprep.mubr.f32.mxu0 0.0
        %v1253 = vand.u32 %v871, 4294901760
        %1254 = vmatmul.mubr.f32.gmra.mxu0 %v1253
        %v1255 = vpop.f32.mrf.mxu0
        %v1256 = vadd.f32 %v1179, %v1255
        %v1257 = vpop.f32.mrf.mxu0
        %1258 = vdwg.mxu0
        %1259 = vmatprep.subr.mxu0 0.0
        %1260 = vmatpush1.msra.mxu0 0.0
        %1261 = vmatprep.subr.mxu0 0.0
        %1262 = vmatpush1.msra.mxu0 0.0
        %1263 = vmatprep.subr.mxu0 0.0
        %1264 = vmatpush1.msra.mxu0 0.0
        %1265 = vmatprep.subr.mxu0 0.0
        %1266 = vmatpush1.msra.mxu0 0.0
        %1267 = vmatprep.subr.mxu0 0.0
        %1268 = vmatpush1.msra.mxu0 0.0
        %1269 = vmatprep.subr.mxu0 0.0
        %1270 = vmatpush1.msra.mxu0 0.0
        %1271 = vmatprep.subr.mxu0 0.0
        %1272 = vmatpush1.msra.mxu0 0.0
        %1273 = vmatprep.subr.mxu0 0.0
        %1274 = vmatpush1.msra.mxu0 0.0
        %1275 = vmatprep.subr.mxu0 0.0
        %1276 = vmatpush1.msra.mxu0 0.0
        %1277 = vmatprep.subr.mxu0 0.0
        %1278 = vmatpush1.msra.mxu0 0.0
        %1279 = vmatprep.subr.mxu0 0.0
        %1280 = vmatpush1.msra.mxu0 0.0
        %1281 = vmatprep.subr.mxu0 0.0
        %1282 = vmatpush1.msra.mxu0 0.0
        %1283 = vmatprep.subr.mxu0 0.0
        %1284 = vmatpush1.msra.mxu0 0.0
        %1285 = vmatprep.subr.mxu0 0.0
        %1286 = vmatpush1.msra.mxu0 0.0
        %1287 = vmatprep.subr.mxu0 0.0
        %v1288 = vand.u32 %v861, 4294901760
        %1289 = vmatpush1.msra.mxu0 %v1288
        %1290 = vmatprep.subr.mxu0 0.0
        %v1291 = vand.u32 %v860, 4294901760
        %1292 = vmatpush1.msra.mxu0 %v1291
        %1293 = vmatprep.subr.mxu0 0.0
        %1294 = vmatpush2.msra.mxu0 0.0
        %1295 = vmatprep.subr.mxu0 0.0
        %1296 = vmatpush2.msra.mxu0 0.0
        %1297 = vmatprep.subr.mxu0 0.0
        %1298 = vmatpush2.msra.mxu0 0.0
        %1299 = vmatprep.subr.mxu0 0.0
        %1300 = vmatpush2.msra.mxu0 0.0
        %1301 = vmatprep.subr.mxu0 0.0
        %1302 = vmatpush2.msra.mxu0 0.0
        %1303 = vmatprep.subr.mxu0 0.0
        %1304 = vmatpush2.msra.mxu0 0.0
        %1305 = vmatprep.subr.mxu0 0.0
        %1306 = vmatpush2.msra.mxu0 0.0
        %1307 = vmatprep.subr.mxu0 0.0
        %1308 = vmatpush2.msra.mxu0 0.0
        %1309 = vmatprep.subr.mxu0 0.0
        %1310 = vmatpush2.msra.mxu0 0.0
        %1311 = vmatprep.subr.mxu0 0.0
        %1312 = vmatpush2.msra.mxu0 0.0
        %1313 = vmatprep.subr.mxu0 0.0
        %1314 = vmatpush2.msra.mxu0 0.0
        %1315 = vmatprep.subr.mxu0 0.0
        %1316 = vmatpush2.msra.mxu0 0.0
        %1317 = vmatprep.subr.mxu0 0.0
        %1318 = vmatpush2.msra.mxu0 0.0
        %1319 = vmatprep.subr.mxu0 0.0
        %1320 = vmatpush2.msra.mxu0 0.0
        %1321 = vmatprep.subr.mxu0 0.0
        %1322 = vmatpush2.msra.mxu0 0.0
        %1323 = vmatprep.subr.mxu0 0.0
        %1324 = vmatpush2.msra.mxu0 0.0
        %1325 = vmatprep.mubr.f32.mxu0 0.0
        %v1326 = vand.u32 %v871, 4294901760
        %1327 = vmatmul.mubr.f32.gmra.mxu0 %v1326
        %v1328 = vpop.f32.mrf.mxu0
        %v1329 = vadd.f32 %v1256, %v1328
        %v1330 = vpop.f32.mrf.mxu0
        %1331 = vdwg.mxu0
        %v1332 = vxor.u32 %v1329, 2147483648
        %v1333 = vmul.f32 %v1332, 1.442695
        %v1334 = vpow.pop %v1333
        %v1335 = vadd.f32 %v1334, 1.0
        %v1336 = vrcp.pop %v1335
        %v1337 = vmul.f32 1.0, %v1336
        %vm1338 = vcmask 518144
        %1339 = vst.msk [vmem:[%s302] sm:$0x7] %vm1338, %v1337
        %vm1340 = vcmask 523264
        %v1342 = vsel %vm1340, %v1337, 0
        %v1345 = vsel %vm1340, %v860, 0
        %v1348 = vsel %vm1340, %v861, 0
        %1350 = vmatprep.subr.mxu0 0.0
        %1351 = vmatpush1.xpose.msra.mxu0 0.0
        %1352 = vmatprep.subr.mxu0 0.0
        %1353 = vmatpush1.xpose.msra.mxu0 0.0
        %1354 = vmatprep.subr.mxu0 0.0
        %1355 = vmatpush1.xpose.msra.mxu0 0.0
        %1356 = vmatprep.subr.mxu0 0.0
        %1357 = vmatpush1.xpose.msra.mxu0 0.0
        %1358 = vmatprep.subr.mxu0 0.0
        %1359 = vmatpush1.xpose.msra.mxu0 0.0
        %1360 = vmatprep.subr.mxu0 0.0
        %1361 = vmatpush1.xpose.msra.mxu0 0.0
        %1362 = vmatprep.subr.mxu0 0.0
        %1363 = vmatpush1.xpose.msra.mxu0 0.0
        %1364 = vmatprep.subr.mxu0 0.0
        %1365 = vmatpush1.xpose.msra.mxu0 0.0
        %1366 = vmatprep.subr.mxu0 0.0
        %1367 = vmatpush1.xpose.msra.mxu0 0.0
        %1368 = vmatprep.subr.mxu0 0.0
        %1369 = vmatpush1.xpose.msra.mxu0 0.0
        %1370 = vmatprep.subr.mxu0 0.0
        %1371 = vmatpush1.xpose.msra.mxu0 0.0
        %1372 = vmatprep.subr.mxu0 0.0
        %1373 = vmatpush1.xpose.msra.mxu0 0.0
        %1374 = vmatprep.subr.mxu0 0.0
        %1375 = vmatpush1.xpose.msra.mxu0 0.0
        %1376 = vmatprep.subr.mxu0 0.0
        %1377 = vmatpush1.xpose.msra.mxu0 0.0
        %1378 = vmatprep.subr.mxu0 0.0
        %v1379 = vand.u32 %v1348, 4294901760
        %1380 = vmatpush1.xpose.msra.mxu0 %v1379
        %1381 = vmatprep.subr.mxu0 0.0
        %v1382 = vand.u32 %v1345, 4294901760
        %1383 = vmatpush1.xpose.msra.mxu0 %v1382
        %1384 = vmatprep.subr.mxu0 0.0
        %1385 = vmatpush2.xpose.msra.mxu0 0.0
        %1386 = vmatprep.subr.mxu0 0.0
        %1387 = vmatpush2.xpose.msra.mxu0 0.0
        %1388 = vmatprep.subr.mxu0 0.0
        %1389 = vmatpush2.xpose.msra.mxu0 0.0
        %1390 = vmatprep.subr.mxu0 0.0
        %1391 = vmatpush2.xpose.msra.mxu0 0.0
        %1392 = vmatprep.subr.mxu0 0.0
        %1393 = vmatpush2.xpose.msra.mxu0 0.0
        %1394 = vmatprep.subr.mxu0 0.0
        %1395 = vmatpush2.xpose.msra.mxu0 0.0
        %1396 = vmatprep.subr.mxu0 0.0
        %1397 = vmatpush2.xpose.msra.mxu0 0.0
        %1398 = vmatprep.subr.mxu0 0.0
        %1399 = vmatpush2.xpose.msra.mxu0 0.0
        %1400 = vmatprep.subr.mxu0 0.0
        %1401 = vmatpush2.xpose.msra.mxu0 0.0
        %1402 = vmatprep.subr.mxu0 0.0
        %1403 = vmatpush2.xpose.msra.mxu0 0.0
        %1404 = vmatprep.subr.mxu0 0.0
        %1405 = vmatpush2.xpose.msra.mxu0 0.0
        %1406 = vmatprep.subr.mxu0 0.0
        %1407 = vmatpush2.xpose.msra.mxu0 0.0
        %1408 = vmatprep.subr.mxu0 0.0
        %1409 = vmatpush2.xpose.msra.mxu0 0.0
        %1410 = vmatprep.subr.mxu0 0.0
        %1411 = vmatpush2.xpose.msra.mxu0 0.0
        %1412 = vmatprep.subr.mxu0 0.0
        %1413 = vmatpush2.xpose.msra.mxu0 0.0
        %1414 = vmatprep.subr.mxu0 0.0
        %1415 = vmatpush2.xpose.msra.mxu0 0.0
        %1416 = vmatprep.mubr.f32.mxu0 0.0
        %v1417 = vand.u32 %v1342, 4294901760
        %v1418 = vsub.f32 %v1342, %v1417
        %v1419 = vand.u32 %v1418, 4294901760
        %v1420 = vsub.f32 %v1418, %v1419
        %v1421 = vand.u32 %v1420, 4294901760
        %1422 = vmatmul.mubr.f32.gmra.mxu0 %v1421
        %v1423 = vpop.f32.mrf.mxu0
        %v1424 = vadd.f32 0.0, %v1423
        %v1425 = vpop.f32.mrf.mxu0
        %1426 = vdwg.mxu0
        %1427 = vmatprep.subr.mxu0 0.0
        %1428 = vmatpush1.xpose.msra.mxu0 0.0
        %1429 = vmatprep.subr.mxu0 0.0
        %1430 = vmatpush1.xpose.msra.mxu0 0.0
        %1431 = vmatprep.subr.mxu0 0.0
        %1432 = vmatpush1.xpose.msra.mxu0 0.0
        %1433 = vmatprep.subr.mxu0 0.0
        %1434 = vmatpush1.xpose.msra.mxu0 0.0
        %1435 = vmatprep.subr.mxu0 0.0
        %1436 = vmatpush1.xpose.msra.mxu0 0.0
        %1437 = vmatprep.subr.mxu0 0.0
        %1438 = vmatpush1.xpose.msra.mxu0 0.0
        %1439 = vmatprep.subr.mxu0 0.0
        %1440 = vmatpush1.xpose.msra.mxu0 0.0
        %1441 = vmatprep.subr.mxu0 0.0
        %1442 = vmatpush1.xpose.msra.mxu0 0.0
        %1443 = vmatprep.subr.mxu0 0.0
        %1444 = vmatpush1.xpose.msra.mxu0 0.0
        %1445 = vmatprep.subr.mxu0 0.0
        %1446 = vmatpush1.xpose.msra.mxu0 0.0
        %1447 = vmatprep.subr.mxu0 0.0
        %1448 = vmatpush1.xpose.msra.mxu0 0.0
        %1449 = vmatprep.subr.mxu0 0.0
        %1450 = vmatpush1.xpose.msra.mxu0 0.0
        %1451 = vmatprep.subr.mxu0 0.0
        %1452 = vmatpush1.xpose.msra.mxu0 0.0
        %1453 = vmatprep.subr.mxu0 0.0
        %1454 = vmatpush1.xpose.msra.mxu0 0.0
        %1455 = vmatprep.subr.mxu0 0.0
        %v1456 = vand.u32 %v1348, 4294901760
        %v1457 = vsub.f32 %v1348, %v1456
        %v1458 = vand.u32 %v1457, 4294901760
        %v1459 = vsub.f32 %v1457, %v1458
        %v1460 = vand.u32 %v1459, 4294901760
        %1461 = vmatpush1.xpose.msra.mxu0 %v1460
        %1462 = vmatprep.subr.mxu0 0.0
        %v1463 = vand.u32 %v1345, 4294901760
        %v1464 = vsub.f32 %v1345, %v1463
        %v1465 = vand.u32 %v1464, 4294901760
        %v1466 = vsub.f32 %v1464, %v1465
        %v1467 = vand.u32 %v1466, 4294901760
        %1468 = vmatpush1.xpose.msra.mxu0 %v1467
        %1469 = vmatprep.subr.mxu0 0.0
        %1470 = vmatpush2.xpose.msra.mxu0 0.0
        %1471 = vmatprep.subr.mxu0 0.0
        %1472 = vmatpush2.xpose.msra.mxu0 0.0
        %1473 = vmatprep.subr.mxu0 0.0
        %1474 = vmatpush2.xpose.msra.mxu0 0.0
        %1475 = vmatprep.subr.mxu0 0.0
        %1476 = vmatpush2.xpose.msra.mxu0 0.0
        %1477 = vmatprep.subr.mxu0 0.0
        %1478 = vmatpush2.xpose.msra.mxu0 0.0
        %1479 = vmatprep.subr.mxu0 0.0
        %1480 = vmatpush2.xpose.msra.mxu0 0.0
        %1481 = vmatprep.subr.mxu0 0.0
        %1482 = vmatpush2.xpose.msra.mxu0 0.0
        %1483 = vmatprep.subr.mxu0 0.0
        %1484 = vmatpush2.xpose.msra.mxu0 0.0
        %1485 = vmatprep.subr.mxu0 0.0
        %1486 = vmatpush2.xpose.msra.mxu0 0.0
        %1487 = vmatprep.subr.mxu0 0.0
        %1488 = vmatpush2.xpose.msra.mxu0 0.0
        %1489 = vmatprep.subr.mxu0 0.0
        %1490 = vmatpush2.xpose.msra.mxu0 0.0
        %1491 = vmatprep.subr.mxu0 0.0
        %1492 = vmatpush2.xpose.msra.mxu0 0.0
        %1493 = vmatprep.subr.mxu0 0.0
        %1494 = vmatpush2.xpose.msra.mxu0 0.0
        %1495 = vmatprep.subr.mxu0 0.0
        %1496 = vmatpush2.xpose.msra.mxu0 0.0
        %1497 = vmatprep.subr.mxu0 0.0
        %1498 = vmatpush2.xpose.msra.mxu0 0.0
        %1499 = vmatprep.subr.mxu0 0.0
        %1500 = vmatpush2.xpose.msra.mxu0 0.0
        %1501 = vmatprep.mubr.f32.mxu0 0.0
        %v1502 = vand.u32 %v1342, 4294901760
        %1503 = vmatmul.mubr.f32.gmra.mxu0 %v1502
        %v1504 = vpop.f32.mrf.mxu0
        %v1505 = vadd.f32 %v1424, %v1504
        %v1506 = vpop.f32.mrf.mxu0
        %1507 = vdwg.mxu0
        %1508 = vmatprep.subr.mxu0 0.0
        %1509 = vmatpush1.xpose.msra.mxu0 0.0
        %1510 = vmatprep.subr.mxu0 0.0
        %1511 = vmatpush1.xpose.msra.mxu0 0.0
        %1512 = vmatprep.subr.mxu0 0.0
        %1513 = vmatpush1.xpose.msra.mxu0 0.0
        %1514 = vmatprep.subr.mxu0 0.0
        %1515 = vmatpush1.xpose.msra.mxu0 0.0
        %1516 = vmatprep.subr.mxu0 0.0
        %1517 = vmatpush1.xpose.msra.mxu0 0.0
        %1518 = vmatprep.subr.mxu0 0.0
        %1519 = vmatpush1.xpose.msra.mxu0 0.0
        %1520 = vmatprep.subr.mxu0 0.0
        %1521 = vmatpush1.xpose.msra.mxu0 0.0
        %1522 = vmatprep.subr.mxu0 0.0
        %1523 = vmatpush1.xpose.msra.mxu0 0.0
        %1524 = vmatprep.subr.mxu0 0.0
        %1525 = vmatpush1.xpose.msra.mxu0 0.0
        %1526 = vmatprep.subr.mxu0 0.0
        %1527 = vmatpush1.xpose.msra.mxu0 0.0
        %1528 = vmatprep.subr.mxu0 0.0
        %1529 = vmatpush1.xpose.msra.mxu0 0.0
        %1530 = vmatprep.subr.mxu0 0.0
        %1531 = vmatpush1.xpose.msra.mxu0 0.0
        %1532 = vmatprep.subr.mxu0 0.0
        %1533 = vmatpush1.xpose.msra.mxu0 0.0
        %1534 = vmatprep.subr.mxu0 0.0
        %1535 = vmatpush1.xpose.msra.mxu0 0.0
        %1536 = vmatprep.subr.mxu0 0.0
        %v1537 = vand.u32 %v1348, 4294901760
        %v1538 = vsub.f32 %v1348, %v1537
        %1539 = vmatpush1.xpose.msra.mxu0 %v1538
        %1540 = vmatprep.subr.mxu0 0.0
        %v1541 = vand.u32 %v1345, 4294901760
        %v1542 = vsub.f32 %v1345, %v1541
        %1543 = vmatpush1.xpose.msra.mxu0 %v1542
        %1544 = vmatprep.subr.mxu0 0.0
        %1545 = vmatpush2.xpose.msra.mxu0 0.0
        %1546 = vmatprep.subr.mxu0 0.0
        %1547 = vmatpush2.xpose.msra.mxu0 0.0
        %1548 = vmatprep.subr.mxu0 0.0
        %1549 = vmatpush2.xpose.msra.mxu0 0.0
        %1550 = vmatprep.subr.mxu0 0.0
        %1551 = vmatpush2.xpose.msra.mxu0 0.0
        %1552 = vmatprep.subr.mxu0 0.0
        %1553 = vmatpush2.xpose.msra.mxu0 0.0
        %1554 = vmatprep.subr.mxu0 0.0
        %1555 = vmatpush2.xpose.msra.mxu0 0.0
        %1556 = vmatprep.subr.mxu0 0.0
        %1557 = vmatpush2.xpose.msra.mxu0 0.0
        %1558 = vmatprep.subr.mxu0 0.0
        %1559 = vmatpush2.xpose.msra.mxu0 0.0
        %1560 = vmatprep.subr.mxu0 0.0
        %1561 = vmatpush2.xpose.msra.mxu0 0.0
        %1562 = vmatprep.subr.mxu0 0.0
        %1563 = vmatpush2.xpose.msra.mxu0 0.0
        %1564 = vmatprep.subr.mxu0 0.0
        %1565 = vmatpush2.xpose.msra.mxu0 0.0
        %1566 = vmatprep.subr.mxu0 0.0
        %1567 = vmatpush2.xpose.msra.mxu0 0.0
        %1568 = vmatprep.subr.mxu0 0.0
        %1569 = vmatpush2.xpose.msra.mxu0 0.0
        %1570 = vmatprep.subr.mxu0 0.0
        %1571 = vmatpush2.xpose.msra.mxu0 0.0
        %1572 = vmatprep.subr.mxu0 0.0
        %1573 = vmatpush2.xpose.msra.mxu0 0.0
        %1574 = vmatprep.subr.mxu0 0.0
        %1575 = vmatpush2.xpose.msra.mxu0 0.0
        %1576 = vmatprep.mubr.f32.mxu0 0.0
        %v1577 = vand.u32 %v1342, 4294901760
        %v1578 = vsub.f32 %v1342, %v1577
        %1579 = vmatmul.mubr.f32.gmra.mxu0 %v1578
        %v1580 = vpop.f32.mrf.mxu0
        %v1581 = vadd.f32 %v1505, %v1580
        %v1582 = vpop.f32.mrf.mxu0
        %1583 = vdwg.mxu0
        %1584 = vmatprep.subr.mxu0 0.0
        %1585 = vmatpush1.xpose.msra.mxu0 0.0
        %1586 = vmatprep.subr.mxu0 0.0
        %1587 = vmatpush1.xpose.msra.mxu0 0.0
        %1588 = vmatprep.subr.mxu0 0.0
        %1589 = vmatpush1.xpose.msra.mxu0 0.0
        %1590 = vmatprep.subr.mxu0 0.0
        %1591 = vmatpush1.xpose.msra.mxu0 0.0
        %1592 = vmatprep.subr.mxu0 0.0
        %1593 = vmatpush1.xpose.msra.mxu0 0.0
        %1594 = vmatprep.subr.mxu0 0.0
        %1595 = vmatpush1.xpose.msra.mxu0 0.0
        %1596 = vmatprep.subr.mxu0 0.0
        %1597 = vmatpush1.xpose.msra.mxu0 0.0
        %1598 = vmatprep.subr.mxu0 0.0
        %1599 = vmatpush1.xpose.msra.mxu0 0.0
        %1600 = vmatprep.subr.mxu0 0.0
        %1601 = vmatpush1.xpose.msra.mxu0 0.0
        %1602 = vmatprep.subr.mxu0 0.0
        %1603 = vmatpush1.xpose.msra.mxu0 0.0
        %1604 = vmatprep.subr.mxu0 0.0
        %1605 = vmatpush1.xpose.msra.mxu0 0.0
        %1606 = vmatprep.subr.mxu0 0.0
        %1607 = vmatpush1.xpose.msra.mxu0 0.0
        %1608 = vmatprep.subr.mxu0 0.0
        %1609 = vmatpush1.xpose.msra.mxu0 0.0
        %1610 = vmatprep.subr.mxu0 0.0
        %1611 = vmatpush1.xpose.msra.mxu0 0.0
        %1612 = vmatprep.subr.mxu0 0.0
        %v1613 = vand.u32 %v1348, 4294901760
        %1614 = vmatpush1.xpose.msra.mxu0 %v1613
        %1615 = vmatprep.subr.mxu0 0.0
        %v1616 = vand.u32 %v1345, 4294901760
        %1617 = vmatpush1.xpose.msra.mxu0 %v1616
        %1618 = vmatprep.subr.mxu0 0.0
        %1619 = vmatpush2.xpose.msra.mxu0 0.0
        %1620 = vmatprep.subr.mxu0 0.0
        %1621 = vmatpush2.xpose.msra.mxu0 0.0
        %1622 = vmatprep.subr.mxu0 0.0
        %1623 = vmatpush2.xpose.msra.mxu0 0.0
        %1624 = vmatprep.subr.mxu0 0.0
        %1625 = vmatpush2.xpose.msra.mxu0 0.0
        %1626 = vmatprep.subr.mxu0 0.0
        %1627 = vmatpush2.xpose.msra.mxu0 0.0
        %1628 = vmatprep.subr.mxu0 0.0
        %1629 = vmatpush2.xpose.msra.mxu0 0.0
        %1630 = vmatprep.subr.mxu0 0.0
        %1631 = vmatpush2.xpose.msra.mxu0 0.0
        %1632 = vmatprep.subr.mxu0 0.0
        %1633 = vmatpush2.xpose.msra.mxu0 0.0
        %1634 = vmatprep.subr.mxu0 0.0
        %1635 = vmatpush2.xpose.msra.mxu0 0.0
        %1636 = vmatprep.subr.mxu0 0.0
        %1637 = vmatpush2.xpose.msra.mxu0 0.0
        %1638 = vmatprep.subr.mxu0 0.0
        %1639 = vmatpush2.xpose.msra.mxu0 0.0
        %1640 = vmatprep.subr.mxu0 0.0
        %1641 = vmatpush2.xpose.msra.mxu0 0.0
        %1642 = vmatprep.subr.mxu0 0.0
        %1643 = vmatpush2.xpose.msra.mxu0 0.0
        %1644 = vmatprep.subr.mxu0 0.0
        %1645 = vmatpush2.xpose.msra.mxu0 0.0
        %1646 = vmatprep.subr.mxu0 0.0
        %1647 = vmatpush2.xpose.msra.mxu0 0.0
        %1648 = vmatprep.subr.mxu0 0.0
        %1649 = vmatpush2.xpose.msra.mxu0 0.0
        %1650 = vmatprep.mubr.f32.mxu0 0.0
        %v1651 = vand.u32 %v1342, 4294901760
        %v1652 = vsub.f32 %v1342, %v1651
        %v1653 = vand.u32 %v1652, 4294901760
        %1654 = vmatmul.mubr.f32.gmra.mxu0 %v1653
        %v1655 = vpop.f32.mrf.mxu0
        %v1656 = vadd.f32 %v1581, %v1655
        %v1657 = vpop.f32.mrf.mxu0
        %1658 = vdwg.mxu0
        %1659 = vmatprep.subr.mxu0 0.0
        %1660 = vmatpush1.xpose.msra.mxu0 0.0
        %1661 = vmatprep.subr.mxu0 0.0
        %1662 = vmatpush1.xpose.msra.mxu0 0.0
        %1663 = vmatprep.subr.mxu0 0.0
        %1664 = vmatpush1.xpose.msra.mxu0 0.0
        %1665 = vmatprep.subr.mxu0 0.0
        %1666 = vmatpush1.xpose.msra.mxu0 0.0
        %1667 = vmatprep.subr.mxu0 0.0
        %1668 = vmatpush1.xpose.msra.mxu0 0.0
        %1669 = vmatprep.subr.mxu0 0.0
        %1670 = vmatpush1.xpose.msra.mxu0 0.0
        %1671 = vmatprep.subr.mxu0 0.0
        %1672 = vmatpush1.xpose.msra.mxu0 0.0
        %1673 = vmatprep.subr.mxu0 0.0
        %1674 = vmatpush1.xpose.msra.mxu0 0.0
        %1675 = vmatprep.subr.mxu0 0.0
        %1676 = vmatpush1.xpose.msra.mxu0 0.0
        %1677 = vmatprep.subr.mxu0 0.0
        %1678 = vmatpush1.xpose.msra.mxu0 0.0
        %1679 = vmatprep.subr.mxu0 0.0
        %1680 = vmatpush1.xpose.msra.mxu0 0.0
        %1681 = vmatprep.subr.mxu0 0.0
        %1682 = vmatpush1.xpose.msra.mxu0 0.0
        %1683 = vmatprep.subr.mxu0 0.0
        %1684 = vmatpush1.xpose.msra.mxu0 0.0
        %1685 = vmatprep.subr.mxu0 0.0
        %1686 = vmatpush1.xpose.msra.mxu0 0.0
        %1687 = vmatprep.subr.mxu0 0.0
        %v1688 = vand.u32 %v1348, 4294901760
        %v1689 = vsub.f32 %v1348, %v1688
        %v1690 = vand.u32 %v1689, 4294901760
        %1691 = vmatpush1.xpose.msra.mxu0 %v1690
        %1692 = vmatprep.subr.mxu0 0.0
        %v1693 = vand.u32 %v1345, 4294901760
        %v1694 = vsub.f32 %v1345, %v1693
        %v1695 = vand.u32 %v1694, 4294901760
        %1696 = vmatpush1.xpose.msra.mxu0 %v1695
        %1697 = vmatprep.subr.mxu0 0.0
        %1698 = vmatpush2.xpose.msra.mxu0 0.0
        %1699 = vmatprep.subr.mxu0 0.0
        %1700 = vmatpush2.xpose.msra.mxu0 0.0
        %1701 = vmatprep.subr.mxu0 0.0
        %1702 = vmatpush2.xpose.msra.mxu0 0.0
        %1703 = vmatprep.subr.mxu0 0.0
        %1704 = vmatpush2.xpose.msra.mxu0 0.0
        %1705 = vmatprep.subr.mxu0 0.0
        %1706 = vmatpush2.xpose.msra.mxu0 0.0
        %1707 = vmatprep.subr.mxu0 0.0
        %1708 = vmatpush2.xpose.msra.mxu0 0.0
        %1709 = vmatprep.subr.mxu0 0.0
        %1710 = vmatpush2.xpose.msra.mxu0 0.0
        %1711 = vmatprep.subr.mxu0 0.0
        %1712 = vmatpush2.xpose.msra.mxu0 0.0
        %1713 = vmatprep.subr.mxu0 0.0
        %1714 = vmatpush2.xpose.msra.mxu0 0.0
        %1715 = vmatprep.subr.mxu0 0.0
        %1716 = vmatpush2.xpose.msra.mxu0 0.0
        %1717 = vmatprep.subr.mxu0 0.0
        %1718 = vmatpush2.xpose.msra.mxu0 0.0
        %1719 = vmatprep.subr.mxu0 0.0
        %1720 = vmatpush2.xpose.msra.mxu0 0.0
        %1721 = vmatprep.subr.mxu0 0.0
        %1722 = vmatpush2.xpose.msra.mxu0 0.0
        %1723 = vmatprep.subr.mxu0 0.0
        %1724 = vmatpush2.xpose.msra.mxu0 0.0
        %1725 = vmatprep.subr.mxu0 0.0
        %1726 = vmatpush2.xpose.msra.mxu0 0.0
        %1727 = vmatprep.subr.mxu0 0.0
        %1728 = vmatpush2.xpose.msra.mxu0 0.0
        %1729 = vmatprep.mubr.f32.mxu0 0.0
        %v1730 = vand.u32 %v1342, 4294901760
        %1731 = vmatmul.mubr.f32.gmra.mxu0 %v1730
        %v1732 = vpop.f32.mrf.mxu0
        %v1733 = vadd.f32 %v1656, %v1732
        %v1734 = vpop.f32.mrf.mxu0
        %1735 = vdwg.mxu0
        %1736 = vmatprep.subr.mxu0 0.0
        %1737 = vmatpush1.xpose.msra.mxu0 0.0
        %1738 = vmatprep.subr.mxu0 0.0
        %1739 = vmatpush1.xpose.msra.mxu0 0.0
        %1740 = vmatprep.subr.mxu0 0.0
        %1741 = vmatpush1.xpose.msra.mxu0 0.0
        %1742 = vmatprep.subr.mxu0 0.0
        %1743 = vmatpush1.xpose.msra.mxu0 0.0
        %1744 = vmatprep.subr.mxu0 0.0
        %1745 = vmatpush1.xpose.msra.mxu0 0.0
        %1746 = vmatprep.subr.mxu0 0.0
        %1747 = vmatpush1.xpose.msra.mxu0 0.0
        %1748 = vmatprep.subr.mxu0 0.0
        %1749 = vmatpush1.xpose.msra.mxu0 0.0
        %1750 = vmatprep.subr.mxu0 0.0
        %1751 = vmatpush1.xpose.msra.mxu0 0.0
        %1752 = vmatprep.subr.mxu0 0.0
        %1753 = vmatpush1.xpose.msra.mxu0 0.0
        %1754 = vmatprep.subr.mxu0 0.0
        %1755 = vmatpush1.xpose.msra.mxu0 0.0
        %1756 = vmatprep.subr.mxu0 0.0
        %1757 = vmatpush1.xpose.msra.mxu0 0.0
        %1758 = vmatprep.subr.mxu0 0.0
        %1759 = vmatpush1.xpose.msra.mxu0 0.0
        %1760 = vmatprep.subr.mxu0 0.0
        %1761 = vmatpush1.xpose.msra.mxu0 0.0
        %1762 = vmatprep.subr.mxu0 0.0
        %1763 = vmatpush1.xpose.msra.mxu0 0.0
        %1764 = vmatprep.subr.mxu0 0.0
        %v1765 = vand.u32 %v1348, 4294901760
        %1766 = vmatpush1.xpose.msra.mxu0 %v1765
        %1767 = vmatprep.subr.mxu0 0.0
        %v1768 = vand.u32 %v1345, 4294901760
        %1769 = vmatpush1.xpose.msra.mxu0 %v1768
        %1770 = vmatprep.subr.mxu0 0.0
        %1771 = vmatpush2.xpose.msra.mxu0 0.0
        %1772 = vmatprep.subr.mxu0 0.0
        %1773 = vmatpush2.xpose.msra.mxu0 0.0
        %1774 = vmatprep.subr.mxu0 0.0
        %1775 = vmatpush2.xpose.msra.mxu0 0.0
        %1776 = vmatprep.subr.mxu0 0.0
        %1777 = vmatpush2.xpose.msra.mxu0 0.0
        %1778 = vmatprep.subr.mxu0 0.0
        %1779 = vmatpush2.xpose.msra.mxu0 0.0
        %1780 = vmatprep.subr.mxu0 0.0
        %1781 = vmatpush2.xpose.msra.mxu0 0.0
        %1782 = vmatprep.subr.mxu0 0.0
        %1783 = vmatpush2.xpose.msra.mxu0 0.0
        %1784 = vmatprep.subr.mxu0 0.0
        %1785 = vmatpush2.xpose.msra.mxu0 0.0
        %1786 = vmatprep.subr.mxu0 0.0
        %1787 = vmatpush2.xpose.msra.mxu0 0.0
        %1788 = vmatprep.subr.mxu0 0.0
        %1789 = vmatpush2.xpose.msra.mxu0 0.0
        %1790 = vmatprep.subr.mxu0 0.0
        %1791 = vmatpush2.xpose.msra.mxu0 0.0
        %1792 = vmatprep.subr.mxu0 0.0
        %1793 = vmatpush2.xpose.msra.mxu0 0.0
        %1794 = vmatprep.subr.mxu0 0.0
        %1795 = vmatpush2.xpose.msra.mxu0 0.0
        %1796 = vmatprep.subr.mxu0 0.0
        %1797 = vmatpush2.xpose.msra.mxu0 0.0
        %1798 = vmatprep.subr.mxu0 0.0
        %1799 = vmatpush2.xpose.msra.mxu0 0.0
        %1800 = vmatprep.subr.mxu0 0.0
        %1801 = vmatpush2.xpose.msra.mxu0 0.0
        %1802 = vmatprep.mubr.f32.mxu0 0.0
        %v1803 = vand.u32 %v1342, 4294901760
        %1804 = vmatmul.mubr.f32.gmra.mxu0 %v1803
        %v1805 = vpop.f32.mrf.mxu0
        %v1806 = vadd.f32 %v1733, %v1805
        %v1807 = vpop.f32.mrf.mxu0
        %1808 = vdwg.mxu0
        %p1809 = scmp.eq.s32.totalorder %s26, 0
        // Predicated region
        $region45: #{tpu_custom_call.1} parent=39 // pred_check
          %p1810 = pneg %p1809
        $region46: #{tpu_custom_call.1} parent=39 // pred_check_branch
          %1812 = sbr.rel (%p1810) target = $region48
        $region47: #{tpu_custom_call.1} parent=39 // pred_region
          %vm1813 = vcmask 124928
          %1814 = vst.msk [vmem:[#allocation2] sm:$0x7] %vm1813, 0.0
        $region48: #{tpu_custom_call.1} parent=39 // pred_fallthru
          _
        %v1815 = vld [vmem:[#allocation2] sm:$0x7]
        %v1816 = vadd.f32 %v1815, %v1806
        %vm1817 = vcmask 124928
        %1818 = vst.msk [vmem:[#allocation2] sm:$0x7] %vm1817, %v1816
        %p1819 = scmp.eq.s32.totalorder %s26, 3
        // Predicated region
        $region49: #{tpu_custom_call.1} parent=39 // pred_check
          %p1820 = pneg %p1819
        $region50: #{tpu_custom_call.1} parent=39 // pred_check_branch
          %1822 = sbr.rel (%p1820) target = $region52
        $region51: #{tpu_custom_call.1} parent=39 // pred_region
          %v1823 = vld [vmem:[#allocation2] sm:$0x7]
          %v1824 = vmul.f32 %v1823, 0.00390625
          %v1825 = vmax.f32 %v1824, 0.0
          %1826 = vst.msk [vmem:[%s306] sm:$0x7] %vm1817, %v1825
        $region52: #{tpu_custom_call.1} parent=39 // pred_fallthru
          _
        %p1827 = scmp.lt.s32.totalorder %s25, 1
        %s1828 = scalar_select %p1827, %s25, 1
        %p1829 = scmp.lt.s32.totalorder %s26, 3
        %s1830 = scalar_select %p1829, %s26, 3
        %s1831 = smul.addr %s1828, 4
        %s1832 = sadd.s32 %s1830, %s1831
        %s1833 = smul.addr %s1832, 4
        %s1834 = scalar_lea.vmem %s5, %s1833
        %p1835 = scmp.lt.s32.totalorder %s25, 1
        %s1836 = scalar_select %p1835, %s25, 1
        %s1837 = smul.addr %s1836, 4
        %s1838 = scalar_lea.vmem %s6, %s1837
        // Predicated region
        $region53: #{tpu_custom_call.1} parent=39 // pred_check
          %p1839 = pneg %p165
        $region54: #{tpu_custom_call.1} parent=39 // pred_check_branch
          %1841 = sbr.rel (%p1839) target = $region56
        $region55: #{tpu_custom_call.1} parent=39 // pred_region
          _
        $region56: #{tpu_custom_call.1} parent=39 // pred_fallthru
          _
        // Predicated region
        $region57: #{tpu_custom_call.1} parent=39 // pred_check
          %p1842 = pneg %p191
        $region58: #{tpu_custom_call.1} parent=39 // pred_check_branch
          %1844 = sbr.rel (%p1842) target = $region60
        $region59: #{tpu_custom_call.1} parent=39 // pred_region
          _
        $region60: #{tpu_custom_call.1} parent=39 // pred_fallthru
          _
      $region40: #{tpu_custom_call.1} parent=5 // pred_fallthru
        _
      %p1845 = scmp.le.s32.totalorder 2, %s16
      // Predicated region
      $region61: #{tpu_custom_call.1} parent=5 // pred_check
        %p1846 = pneg %p1845
      $region62: #{tpu_custom_call.1} parent=5 // pred_check_branch
        %1848 = sbr.rel (%p1846) target = $region64
      $region63: #{tpu_custom_call.1} parent=5 // pred_region
        %s1849 = ssub.s32 %s16, 2
        // Predicated region
        $region65: #{tpu_custom_call.1} parent=63 // pred_check
          %p1850 = pneg %p171
        $region66: #{tpu_custom_call.1} parent=63 // pred_check_branch
          %1852 = sbr.rel (%p1850) target = $region68
        $region67: #{tpu_custom_call.1} parent=63 // pred_region
          %p1853 = scmp.lt.s32.totalorder %s27, 1
          %s1854 = scalar_select %p1853, %s27, 1
          %p1855 = scmp.lt.s32.totalorder %s28, 3
          %s1856 = scalar_select %p1855, %s28, 3
          %s1857 = smul.addr %s1854, 4
          %s1858 = sadd.s32 %s1856, %s1857
          %s1859 = smul.addr %s1858, 4
          %s1860 = scalar_lea.vmem %s5, %s1859
        $region68: #{tpu_custom_call.1} parent=63 // pred_fallthru
          _
        // Predicated region
        $region69: #{tpu_custom_call.1} parent=63 // pred_check
          %p1861 = pneg %p197
        $region70: #{tpu_custom_call.1} parent=63 // pred_check_branch
          %1863 = sbr.rel (%p1861) target = $region72
        $region71: #{tpu_custom_call.1} parent=63 // pred_region
          %p1864 = scmp.lt.s32.totalorder %s27, 1
          %s1865 = scalar_select %p1864, %s27, 1
          %s1866 = smul.addr %s1865, 4
          %s1867 = scalar_lea.vmem %s6, %s1866
        $region72: #{tpu_custom_call.1} parent=63 // pred_fallthru
          _
      $region64: #{tpu_custom_call.1} parent=5 // pred_fallthru
        _
    $region6: #{tpu_custom_call.1} parent=1 // loop_footer
      %s20 = sadd.s32 1, %s16
    $region7: #{tpu_custom_call.1} parent=1 // loop_footer_branch
      %15 = sbr.rel target = $region3
    $region8: #{tpu_custom_call.1} parent=1 // loop_exit
      _
    %1868 = vsyncpa [#allocation4], 1
    %s1869 = scalar_lea.sflag [#allocation4], 1
    %1870 = vsyncpa %s1869, 1

</llo_original>
